<compile_context>
chip_gen: v6e
topology: v6e:2x2x1
jax: 0.10.0
libtpu: 0.0.40
codegen_flags: <defaults>
</compile_context>

<pallas_src>
import numpy as np
import jax
import jax.numpy as jnp
from jax import lax
from jax.experimental import pallas as pl
from jax.experimental.pallas import tpu as pltpu


def _bilinear_matrix_np(out_size: int, in_size: int) -> np.ndarray:
    """Row-stochastic (out_size, in_size) matrix for 1-D bilinear resize,
    align_corners=True (matches PyTorch F.interpolate)."""
    if out_size == 1:
        src = np.zeros((1,), np.float64)
    else:
        src = np.arange(out_size, dtype=np.float64) * (in_size - 1) / (out_size - 1)
    i0 = np.clip(np.floor(src).astype(np.int64), 0, in_size - 1)
    i1 = np.minimum(i0 + 1, in_size - 1)
    w1 = src - i0
    w0 = 1.0 - w1
    m = np.zeros((out_size, in_size), np.float64)
    np.add.at(m, (np.arange(out_size), i0), w0)
    np.add.at(m, (np.arange(out_size), i1), w1)
    return m.astype(np.float32)


def _pick_tile(total: int, candidates=(128, 64, 32, 16, 8)) -> int:
    for c in candidates:
        if total % c == 0:
            return c
    return total


def _make_kernel_a(H, W, Cin, Cout, Ncls, Wout, RS):
    """Conv3x3 + BN/ReLU + 1x1 cls + W-axis upsample for one H-strip.

    Refs:
      x_ref    : (1, H+2, W+2, Cin)  padded NHWC bf16 image (resident per n)
      w3_ref   : (9*Cin, Cout)       folded 3x3 conv weights, bf16
      shift_ref: (1, Cout)           folded BN shift, f32
      wcls_ref : (Ncls, Cout)        1x1 cls conv weights, bf16
      wwt_ref  : (W, Wout)           W-axis bilinear matrix (transposed), bf16
      t_ref    : (1, Ncls, RS, Wout) bf16 output block (intermediate t)
      patch_ref: VMEM (RS*W, 9*Cin)  bf16 strip im2col scratch
    """

    def kernel(x_ref, w3_ref, shift_ref, wcls_ref, wwt_ref, t_ref, patch_ref):
        s = pl.program_id(1)
        h0 = pl.multiple_of(s * RS, RS)

        # Strip + halo rows from the resident padded image: (RS+2, W+2, Cin).
        xs = x_ref[0, pl.ds(h0, RS + 2), :, :]

        # --- 1) strip im2col (only RS rows of scratch; input already bf16) ---
        for ky in range(3):
            for kx in range(3):
                tap = ky * 3 + kx
                patch_ref[:, tap * Cin:(tap + 1) * Cin] = (
                    xs[ky:ky + RS, kx:kx + W, :].reshape(RS * W, Cin))

        # --- 2) 3x3 conv: one K=9*Cin MXU matmul; BN shift + ReLU in f32 -----
        y = jnp.dot(patch_ref[...], w3_ref[...],
                    preferred_element_type=jnp.float32)
        y = jnp.maximum(y + shift_ref[...], 0.0).astype(jnp.bfloat16)  # (RS*W, Cout)

        # --- 3) 1x1 cls conv, ONE NT matmul for the whole strip --------------
        # (Ncls, Cout) x (RS*W, Cout)^T -> (Ncls, RS*W): MXU supplies the
        # channels->sublanes transpose for free.
        lcm = lax.dot_general(wcls_ref[...], y, (((1,), (1,)), ((), ())),
                              preferred_element_type=jnp.float32)
        lcm = lcm.astype(jnp.bfloat16)                                  # (Ncls, RS*W)

        # --- 4) W-axis bilinear upsample (align_corners=True), per row -------
        wwt = wwt_ref[...]
        for r in range(RS):
            row = lcm[:, r * W:(r + 1) * W]                             # (Ncls, W)
            trow = jnp.dot(row, wwt, preferred_element_type=jnp.float32)
            t_ref[0, :, r, :] = trow.astype(jnp.bfloat16)

    return kernel


def _kernel_b(t_ref, wh_ref, o_ref):
    """H-axis bilinear upsample for one (image, class, Hout-tile).

    t_ref : (1, 1, H, Wout) bf16     wh_ref: (TH, H) bf16
    o_ref : (1, 1, TH, Wout) f32  (lane-dense NCHW store)
    """
    o_ref[0, 0] = jnp.dot(wh_ref[...], t_ref[0, 0],
                          preferred_element_type=jnp.float32)


def seghead_forward(feat_nchw, w3, gamma, beta, run_mean, run_var, wcls,
                    size, eps=1e-5):
    """feat_nchw: (N, Cin, H, W) float32. Returns (N, Ncls, Hout, Wout) float32."""
    N, Cin, H, W = feat_nchw.shape
    Cout = w3.shape[0]
    Ncls = wcls.shape[0]
    Hout, Wout = size

    # --- parameter folding + layout plumbing (plain JAX) ---------------------
    inv_std = gamma / jnp.sqrt(run_var + eps)                       # (Cout,)
    shift = (beta - run_mean * inv_std).reshape(1, Cout).astype(jnp.float32)
    w3_folded = w3 * inv_std[:, None, None, None]                   # fold BN scale
    w3_r = jnp.transpose(w3_folded, (2, 3, 1, 0)).reshape(
        9 * Cin, Cout).astype(jnp.bfloat16)                         # (9*Cin, Cout)
    wcls_r = wcls.reshape(Ncls, Cout).astype(jnp.bfloat16)          # (Ncls, Cout)
    wh_m = jnp.asarray(_bilinear_matrix_np(Hout, H)).astype(jnp.bfloat16)     # (Hout, H)
    wwt_m = jnp.asarray(_bilinear_matrix_np(Wout, W).T).astype(jnp.bfloat16)  # (W, Wout)

    # NCHW -> padded NHWC bf16 in one fused pass (halves input HBM DMA).
    x_pad = jnp.pad(jnp.transpose(feat_nchw, (0, 2, 3, 1)),
                    ((0, 0), (1, 1), (1, 1), (0, 0))).astype(jnp.bfloat16)

    RS = 8 if H % 8 == 0 else H        # rows per strip (grid axis 1 of kernel A)
    TH = _pick_tile(Hout)              # Hout tile (grid axis 2 of kernel B)

    # ---- kernel A: conv3x3+BN+ReLU -> 1x1 cls -> W-upsample, bf16 t to HBM --
    kernel_a = _make_kernel_a(H, W, Cin, Cout, Ncls, Wout, RS)
    t = pl.pallas_call(
        kernel_a,
        out_shape=jax.ShapeDtypeStruct((N, Ncls, H, Wout), jnp.bfloat16),
        grid_spec=pltpu.PrefetchScalarGridSpec(
            num_scalar_prefetch=0,
            grid=(N, H // RS),
            in_specs=[
                pl.BlockSpec((1, H + 2, W + 2, Cin), lambda n, s: (n, 0, 0, 0)),
                pl.BlockSpec((9 * Cin, Cout), lambda n, s: (0, 0)),
                pl.BlockSpec((1, Cout), lambda n, s: (0, 0)),
                pl.BlockSpec((Ncls, Cout), lambda n, s: (0, 0)),
                pl.BlockSpec((W, Wout), lambda n, s: (0, 0)),
            ],
            out_specs=pl.BlockSpec((1, Ncls, RS, Wout), lambda n, s: (n, 0, s, 0)),
            scratch_shapes=[pltpu.VMEM((RS * W, 9 * Cin), jnp.bfloat16)],
        ),
        compiler_params=pltpu.CompilerParams(
            dimension_semantics=("parallel", "parallel"),
            vmem_limit_bytes=48 * 1024 * 1024),
    )(x_pad, w3_r, shift, wcls_r, wwt_m)

    # ---- kernel B: H-axis upsample, tiled over (batch, class, Hout tiles) ---
    out = pl.pallas_call(
        _kernel_b,
        out_shape=jax.ShapeDtypeStruct((N, Ncls, Hout, Wout), jnp.float32),
        grid_spec=pltpu.PrefetchScalarGridSpec(
            num_scalar_prefetch=0,
            grid=(N, Ncls, Hout // TH),
            in_specs=[
                pl.BlockSpec((1, 1, H, Wout), lambda n, c, ho: (n, c, 0, 0)),
                pl.BlockSpec((TH, H), lambda n, c, ho: (ho, 0)),
            ],
            out_specs=pl.BlockSpec((1, 1, TH, Wout),
                                   lambda n, c, ho: (n, c, ho, 0)),
        ),
        compiler_params=pltpu.CompilerParams(
            dimension_semantics=("parallel", "parallel", "parallel"),
            vmem_limit_bytes=32 * 1024 * 1024),
    )(t, wh_m)

    return out  # already NCHW


def seghead_reference(feat_nchw, w3, gamma, beta, run_mean, run_var, wcls,
                      size, eps=1e-5):
    """Pure-JAX f32 reference (lax conv + separable bilinear interp)."""
    y = jax.lax.conv_general_dilated(
        feat_nchw, w3, window_strides=(1, 1), padding=((1, 1), (1, 1)),
        dimension_numbers=("NCHW", "OIHW", "NCHW"))
    inv_std = gamma / jnp.sqrt(run_var + eps)
    y = y * inv_std[None, :, None, None] + (beta - run_mean * inv_std)[None, :, None, None]
    y = jnp.maximum(y, 0.0)
    logits = jax.lax.conv_general_dilated(
        y, wcls, window_strides=(1, 1), padding=((0, 0), (0, 0)),
        dimension_numbers=("NCHW", "OIHW", "NCHW"))
    Hout, Wout = size
    wh = jnp.asarray(_bilinear_matrix_np(Hout, logits.shape[2]))
    ww = jnp.asarray(_bilinear_matrix_np(Wout, logits.shape[3]))
    t = jnp.einsum('oh,nchw->ncow', wh, logits)
    return jnp.einsum('pw,ncow->ncop', ww, t)


if __name__ == "__main__":
    key = jax.random.PRNGKey(0)
    N, Cin, H, W = 2, 4, 16, 16     # batch, in_dim, feature spatial
    Cout, Ncls = 8, 3               # out_dim, cls
    size = (32, 64)                 # SegHead "size" (small stand-in for [512, 1024])

    ks = jax.random.split(key, 7)
    feat = jax.random.normal(ks[0], (N, Cin, H, W), jnp.float32)
    w3 = 0.1 * jax.random.normal(ks[1], (Cout, Cin, 3, 3), jnp.float32)
    wcls = 0.1 * jax.random.normal(ks[2], (Ncls, Cout, 1, 1), jnp.float32)
    gamma = 1.0 + 0.1 * jax.random.normal(ks[3], (Cout,), jnp.float32)
    beta = 0.1 * jax.random.normal(ks[4], (Cout,), jnp.float32)
    run_mean = 0.1 * jax.random.normal(ks[5], (Cout,), jnp.float32)
    run_var = jax.random.uniform(ks[6], (Cout,), jnp.float32, minval=0.5, maxval=1.5)

    out = seghead_forward(feat, w3, gamma, beta, run_mean, run_var, wcls, size)
    out = jax.block_until_ready(out)

    ref = seghead_reference(feat, w3, gamma, beta, run_mean, run_var, wcls, size)
    assert out.shape == (N, Ncls, size[0], size[1])
    # bf16 matmul operands / bf16 intermediate t with f32 accumulation ->
    # loosen tolerance vs the f32 reference.
    np.testing.assert_allclose(np.asarray(out), np.asarray(ref), atol=2e-2, rtol=2e-2)

    print("KERNEL_OK")
</pallas_src>

<mosaic_0001>
module attributes {stable_mosaic.version = 11 : i64} {
  func.func @kernel(%arg0: i32, %arg1: i32, %arg2: memref<1x18x18x4xbf16, #tpu.memory_space<vmem>>, %arg3: memref<36x8xbf16, #tpu.memory_space<vmem>>, %arg4: memref<1x8xf32, #tpu.memory_space<vmem>>, %arg5: memref<3x8xbf16, #tpu.memory_space<vmem>>, %arg6: memref<16x64xbf16, #tpu.memory_space<vmem>>, %arg7: memref<1x3x8x64xbf16, #tpu.memory_space<vmem>>, %arg8: memref<128x36xbf16, #tpu.memory_space<vmem>>) attributes {dimension_semantics = [#tpu.dimension_semantics<parallel>, #tpu.dimension_semantics<parallel>], iteration_bounds = array<i64: 2, 2>, scalar_prefetch = 0 : i64, scratch_operands = 1 : i64, tpu.core_type = #tpu.core_type<tc>, window_params = [{transform_indices = @transform_0, window_bounds = array<i64: 1, 18, 18, 4>}, {pipeline_mode = #tpu.pipeline_mode<synchronous>, transform_indices = @transform_1, window_bounds = array<i64: 36, 8>}, {pipeline_mode = #tpu.pipeline_mode<synchronous>, transform_indices = @transform_2, window_bounds = array<i64: 1, 8>}, {pipeline_mode = #tpu.pipeline_mode<synchronous>, transform_indices = @transform_3, window_bounds = array<i64: 3, 8>}, {pipeline_mode = #tpu.pipeline_mode<synchronous>, transform_indices = @transform_4, window_bounds = array<i64: 16, 64>}, {transform_indices = @transform_5, window_bounds = array<i64: 1, 3, 8, 64>}]} {
    %c8_i32 = arith.constant 8 : i32
    %0 = arith.muli %arg1, %c8_i32 : i32
    %1 = tpu.assume_multiple %0, 8 : i32
    %c0 = arith.constant 0 : index
    %2 = arith.index_cast %1 : i32 to index
    %c0_0 = arith.constant 0 : index
    %c0_1 = arith.constant 0 : index
    %3 = vector.load %arg2[%c0, %2, %c0_0, %c0_1] : memref<1x18x18x4xbf16, #tpu.memory_space<vmem>>, vector<1x10x18x4xbf16>
    %4 = vector.shape_cast %3 : vector<1x10x18x4xbf16> to vector<10x18x4xbf16>
    %5 = vector.extract_strided_slice %4 {offsets = [0, 0, 0], sizes = [8, 16, 4], strides = [1, 1, 1]} : vector<10x18x4xbf16> to vector<8x16x4xbf16>
    %6 = vector.shape_cast %5 : vector<8x16x4xbf16> to vector<128x4xbf16>
    %c0_2 = arith.constant 0 : index
    %c0_3 = arith.constant 0 : index
    %7 = vector.load %arg8[%c0_2, %c0_3] : memref<128x36xbf16, #tpu.memory_space<vmem>>, vector<128x4xbf16>
    tpu.vector_store %arg8[%c0_2, %c0_3], %6 {strides = array<i32>} : memref<128x36xbf16, #tpu.memory_space<vmem>>, vector<128x4xbf16>,
    %8 = vector.extract_strided_slice %4 {offsets = [0, 1, 0], sizes = [8, 16, 4], strides = [1, 1, 1]} : vector<10x18x4xbf16> to vector<8x16x4xbf16>
    %9 = vector.shape_cast %8 : vector<8x16x4xbf16> to vector<128x4xbf16>
    %c0_4 = arith.constant 0 : index
    %c4 = arith.constant 4 : index
    %10 = vector.load %arg8[%c0_4, %c4] : memref<128x36xbf16, #tpu.memory_space<vmem>>, vector<128x4xbf16>
    tpu.vector_store %arg8[%c0_4, %c4], %9 {strides = array<i32>} : memref<128x36xbf16, #tpu.memory_space<vmem>>, vector<128x4xbf16>,
    %11 = vector.extract_strided_slice %4 {offsets = [0, 2, 0], sizes = [8, 16, 4], strides = [1, 1, 1]} : vector<10x18x4xbf16> to vector<8x16x4xbf16>
    %12 = vector.shape_cast %11 : vector<8x16x4xbf16> to vector<128x4xbf16>
    %c0_5 = arith.constant 0 : index
    %c8 = arith.constant 8 : index
    %13 = vector.load %arg8[%c0_5, %c8] : memref<128x36xbf16, #tpu.memory_space<vmem>>, vector<128x4xbf16>
    tpu.vector_store %arg8[%c0_5, %c8], %12 {strides = array<i32>} : memref<128x36xbf16, #tpu.memory_space<vmem>>, vector<128x4xbf16>,
    %14 = vector.extract_strided_slice %4 {offsets = [1, 0, 0], sizes = [8, 16, 4], strides = [1, 1, 1]} : vector<10x18x4xbf16> to vector<8x16x4xbf16>
    %15 = vector.shape_cast %14 : vector<8x16x4xbf16> to vector<128x4xbf16>
    %c0_6 = arith.constant 0 : index
    %c12 = arith.constant 12 : index
    %16 = vector.load %arg8[%c0_6, %c12] : memref<128x36xbf16, #tpu.memory_space<vmem>>, vector<128x4xbf16>
    tpu.vector_store %arg8[%c0_6, %c12], %15 {strides = array<i32>} : memref<128x36xbf16, #tpu.memory_space<vmem>>, vector<128x4xbf16>,
    %17 = vector.extract_strided_slice %4 {offsets = [1, 1, 0], sizes = [8, 16, 4], strides = [1, 1, 1]} : vector<10x18x4xbf16> to vector<8x16x4xbf16>
    %18 = vector.shape_cast %17 : vector<8x16x4xbf16> to vector<128x4xbf16>
    %c0_7 = arith.constant 0 : index
    %c16 = arith.constant 16 : index
    %19 = vector.load %arg8[%c0_7, %c16] : memref<128x36xbf16, #tpu.memory_space<vmem>>, vector<128x4xbf16>
    tpu.vector_store %arg8[%c0_7, %c16], %18 {strides = array<i32>} : memref<128x36xbf16, #tpu.memory_space<vmem>>, vector<128x4xbf16>,
    %20 = vector.extract_strided_slice %4 {offsets = [1, 2, 0], sizes = [8, 16, 4], strides = [1, 1, 1]} : vector<10x18x4xbf16> to vector<8x16x4xbf16>
    %21 = vector.shape_cast %20 : vector<8x16x4xbf16> to vector<128x4xbf16>
    %c0_8 = arith.constant 0 : index
    %c20 = arith.constant 20 : index
    %22 = vector.load %arg8[%c0_8, %c20] : memref<128x36xbf16, #tpu.memory_space<vmem>>, vector<128x4xbf16>
    tpu.vector_store %arg8[%c0_8, %c20], %21 {strides = array<i32>} : memref<128x36xbf16, #tpu.memory_space<vmem>>, vector<128x4xbf16>,
    %23 = vector.extract_strided_slice %4 {offsets = [2, 0, 0], sizes = [8, 16, 4], strides = [1, 1, 1]} : vector<10x18x4xbf16> to vector<8x16x4xbf16>
    %24 = vector.shape_cast %23 : vector<8x16x4xbf16> to vector<128x4xbf16>
    %c0_9 = arith.constant 0 : index
    %c24 = arith.constant 24 : index
    %25 = vector.load %arg8[%c0_9, %c24] : memref<128x36xbf16, #tpu.memory_space<vmem>>, vector<128x4xbf16>
    tpu.vector_store %arg8[%c0_9, %c24], %24 {strides = array<i32>} : memref<128x36xbf16, #tpu.memory_space<vmem>>, vector<128x4xbf16>,
    %26 = vector.extract_strided_slice %4 {offsets = [2, 1, 0], sizes = [8, 16, 4], strides = [1, 1, 1]} : vector<10x18x4xbf16> to vector<8x16x4xbf16>
    %27 = vector.shape_cast %26 : vector<8x16x4xbf16> to vector<128x4xbf16>
    %c0_10 = arith.constant 0 : index
    %c28 = arith.constant 28 : index
    %28 = vector.load %arg8[%c0_10, %c28] : memref<128x36xbf16, #tpu.memory_space<vmem>>, vector<128x4xbf16>
    tpu.vector_store %arg8[%c0_10, %c28], %27 {strides = array<i32>} : memref<128x36xbf16, #tpu.memory_space<vmem>>, vector<128x4xbf16>,
    %29 = vector.extract_strided_slice %4 {offsets = [2, 2, 0], sizes = [8, 16, 4], strides = [1, 1, 1]} : vector<10x18x4xbf16> to vector<8x16x4xbf16>
    %30 = vector.shape_cast %29 : vector<8x16x4xbf16> to vector<128x4xbf16>
    %c0_11 = arith.constant 0 : index
    %c32 = arith.constant 32 : index
    %31 = vector.load %arg8[%c0_11, %c32] : memref<128x36xbf16, #tpu.memory_space<vmem>>, vector<128x4xbf16>
    tpu.vector_store %arg8[%c0_11, %c32], %30 {strides = array<i32>} : memref<128x36xbf16, #tpu.memory_space<vmem>>, vector<128x4xbf16>,
    %c0_12 = arith.constant 0 : index
    %c0_13 = arith.constant 0 : index
    %32 = vector.load %arg8[%c0_12, %c0_13] : memref<128x36xbf16, #tpu.memory_space<vmem>>, vector<128x36xbf16>
    %c0_14 = arith.constant 0 : index
    %c0_15 = arith.constant 0 : index
    %33 = vector.load %arg3[%c0_14, %c0_15] : memref<36x8xbf16, #tpu.memory_space<vmem>>, vector<36x8xbf16>
    %cst = arith.constant dense<0.000000e+00> : vector<128x8xf32>
    %34 = tpu.matmul %32, %33, %cst {dimension_numbers = #tpu.dot_dimension_numbers<[1], [0], [0], [1], [0, 0, 1, 1], [], []>} : vector<128x36xbf16>, vector<36x8xbf16>, vector<128x8xf32> -> vector<128x8xf32>
    %c0_16 = arith.constant 0 : index
    %c0_17 = arith.constant 0 : index
    %35 = vector.load %arg4[%c0_16, %c0_17] : memref<1x8xf32, #tpu.memory_space<vmem>>, vector<1x8xf32>
    %36 = vector.broadcast %35 : vector<1x8xf32> to vector<128x8xf32>
    %37 = arith.addf %34, %36 : vector<128x8xf32>
    %cst_18 = arith.constant 0.000000e+00 : f32
    %38 = vector.broadcast %cst_18 : f32 to vector<128x8xf32>
    %39 = arith.maximumf %37, %38 : vector<128x8xf32>
    %40 = arith.truncf %39 : vector<128x8xf32> to vector<128x8xbf16>
    %c0_19 = arith.constant 0 : index
    %c0_20 = arith.constant 0 : index
    %41 = vector.load %arg5[%c0_19, %c0_20] : memref<3x8xbf16, #tpu.memory_space<vmem>>, vector<3x8xbf16>
    %cst_21 = arith.constant dense<0.000000e+00> : vector<3x128xf32>
    %42 = tpu.matmul %41, %40, %cst_21 {dimension_numbers = #tpu.dot_dimension_numbers<[1], [1], [0], [0], [0, 0, 1, 0], [], []>} : vector<3x8xbf16>, vector<128x8xbf16>, vector<3x128xf32> -> vector<3x128xf32>
    %43 = arith.truncf %42 : vector<3x128xf32> to vector<3x128xbf16>
    %c0_22 = arith.constant 0 : index
    %c0_23 = arith.constant 0 : index
    %44 = vector.load %arg6[%c0_22, %c0_23] : memref<16x64xbf16, #tpu.memory_space<vmem>>, vector<16x64xbf16>
    %45 = vector.extract_strided_slice %43 {offsets = [0, 0], sizes = [3, 16], strides = [1, 1]} : vector<3x128xbf16> to vector<3x16xbf16>
    %cst_24 = arith.constant dense<0.000000e+00> : vector<3x64xf32>
    %46 = tpu.matmul %45, %44, %cst_24 {dimension_numbers = #tpu.dot_dimension_numbers<[1], [0], [0], [1], [0, 0, 1, 1], [], []>} : vector<3x16xbf16>, vector<16x64xbf16>, vector<3x64xf32> -> vector<3x64xf32>
    %47 = arith.truncf %46 : vector<3x64xf32> to vector<3x64xbf16>
    %c0_25 = arith.constant 0 : index
    %c0_26 = arith.constant 0 : index
    %c0_27 = arith.constant 0 : index
    %c0_28 = arith.constant 0 : index
    %48 = vector.load %arg7[%c0_25, %c0_26, %c0_27, %c0_28] : memref<1x3x8x64xbf16, #tpu.memory_space<vmem>>, vector<1x3x1x64xbf16>
    %49 = vector.shape_cast %48 : vector<1x3x1x64xbf16> to vector<3x64xbf16>
    %50 = vector.shape_cast %47 : vector<3x64xbf16> to vector<1x3x1x64xbf16>
    tpu.vector_store %arg7[%c0_25, %c0_26, %c0_27, %c0_28], %50 {strides = array<i32>} : memref<1x3x8x64xbf16, #tpu.memory_space<vmem>>, vector<1x3x1x64xbf16>,
    %51 = vector.extract_strided_slice %43 {offsets = [0, 16], sizes = [3, 16], strides = [1, 1]} : vector<3x128xbf16> to vector<3x16xbf16>
    %cst_29 = arith.constant dense<0.000000e+00> : vector<3x64xf32>
    %52 = tpu.matmul %51, %44, %cst_29 {dimension_numbers = #tpu.dot_dimension_numbers<[1], [0], [0], [1], [0, 0, 1, 1], [], []>} : vector<3x16xbf16>, vector<16x64xbf16>, vector<3x64xf32> -> vector<3x64xf32>
    %53 = arith.truncf %52 : vector<3x64xf32> to vector<3x64xbf16>
    %c0_30 = arith.constant 0 : index
    %c0_31 = arith.constant 0 : index
    %c1 = arith.constant 1 : index
    %c0_32 = arith.constant 0 : index
    %54 = vector.load %arg7[%c0_30, %c0_31, %c1, %c0_32] : memref<1x3x8x64xbf16, #tpu.memory_space<vmem>>, vector<1x3x1x64xbf16>
    %55 = vector.shape_cast %54 : vector<1x3x1x64xbf16> to vector<3x64xbf16>
    %56 = vector.shape_cast %53 : vector<3x64xbf16> to vector<1x3x1x64xbf16>
    tpu.vector_store %arg7[%c0_30, %c0_31, %c1, %c0_32], %56 {strides = array<i32>} : memref<1x3x8x64xbf16, #tpu.memory_space<vmem>>, vector<1x3x1x64xbf16>,
    %57 = vector.extract_strided_slice %43 {offsets = [0, 32], sizes = [3, 16], strides = [1, 1]} : vector<3x128xbf16> to vector<3x16xbf16>
    %cst_33 = arith.constant dense<0.000000e+00> : vector<3x64xf32>
    %58 = tpu.matmul %57, %44, %cst_33 {dimension_numbers = #tpu.dot_dimension_numbers<[1], [0], [0], [1], [0, 0, 1, 1], [], []>} : vector<3x16xbf16>, vector<16x64xbf16>, vector<3x64xf32> -> vector<3x64xf32>
    %59 = arith.truncf %58 : vector<3x64xf32> to vector<3x64xbf16>
    %c0_34 = arith.constant 0 : index
    %c0_35 = arith.constant 0 : index
    %c2 = arith.constant 2 : index
    %c0_36 = arith.constant 0 : index
    %60 = vector.load %arg7[%c0_34, %c0_35, %c2, %c0_36] : memref<1x3x8x64xbf16, #tpu.memory_space<vmem>>, vector<1x3x1x64xbf16>
    %61 = vector.shape_cast %60 : vector<1x3x1x64xbf16> to vector<3x64xbf16>
    %62 = vector.shape_cast %59 : vector<3x64xbf16> to vector<1x3x1x64xbf16>
    tpu.vector_store %arg7[%c0_34, %c0_35, %c2, %c0_36], %62 {strides = array<i32>} : memref<1x3x8x64xbf16, #tpu.memory_space<vmem>>, vector<1x3x1x64xbf16>,
    %63 = vector.extract_strided_slice %43 {offsets = [0, 48], sizes = [3, 16], strides = [1, 1]} : vector<3x128xbf16> to vector<3x16xbf16>
    %cst_37 = arith.constant dense<0.000000e+00> : vector<3x64xf32>
    %64 = tpu.matmul %63, %44, %cst_37 {dimension_numbers = #tpu.dot_dimension_numbers<[1], [0], [0], [1], [0, 0, 1, 1], [], []>} : vector<3x16xbf16>, vector<16x64xbf16>, vector<3x64xf32> -> vector<3x64xf32>
    %65 = arith.truncf %64 : vector<3x64xf32> to vector<3x64xbf16>
    %c0_38 = arith.constant 0 : index
    %c0_39 = arith.constant 0 : index
    %c3 = arith.constant 3 : index
    %c0_40 = arith.constant 0 : index
    %66 = vector.load %arg7[%c0_38, %c0_39, %c3, %c0_40] : memref<1x3x8x64xbf16, #tpu.memory_space<vmem>>, vector<1x3x1x64xbf16>
    %67 = vector.shape_cast %66 : vector<1x3x1x64xbf16> to vector<3x64xbf16>
    %68 = vector.shape_cast %65 : vector<3x64xbf16> to vector<1x3x1x64xbf16>
    tpu.vector_store %arg7[%c0_38, %c0_39, %c3, %c0_40], %68 {strides = array<i32>} : memref<1x3x8x64xbf16, #tpu.memory_space<vmem>>, vector<1x3x1x64xbf16>,
    %69 = vector.extract_strided_slice %43 {offsets = [0, 64], sizes = [3, 16], strides = [1, 1]} : vector<3x128xbf16> to vector<3x16xbf16>
    %cst_41 = arith.constant dense<0.000000e+00> : vector<3x64xf32>
    %70 = tpu.matmul %69, %44, %cst_41 {dimension_numbers = #tpu.dot_dimension_numbers<[1], [0], [0], [1], [0, 0, 1, 1], [], []>} : vector<3x16xbf16>, vector<16x64xbf16>, vector<3x64xf32> -> vector<3x64xf32>
    %71 = arith.truncf %70 : vector<3x64xf32> to vector<3x64xbf16>
    %c0_42 = arith.constant 0 : index
    %c0_43 = arith.constant 0 : index
    %c4_44 = arith.constant 4 : index
    %c0_45 = arith.constant 0 : index
    %72 = vector.load %arg7[%c0_42, %c0_43, %c4_44, %c0_45] : memref<1x3x8x64xbf16, #tpu.memory_space<vmem>>, vector<1x3x1x64xbf16>
    %73 = vector.shape_cast %72 : vector<1x3x1x64xbf16> to vector<3x64xbf16>
    %74 = vector.shape_cast %71 : vector<3x64xbf16> to vector<1x3x1x64xbf16>
    tpu.vector_store %arg7[%c0_42, %c0_43, %c4_44, %c0_45], %74 {strides = array<i32>} : memref<1x3x8x64xbf16, #tpu.memory_space<vmem>>, vector<1x3x1x64xbf16>,
    %75 = vector.extract_strided_slice %43 {offsets = [0, 80], sizes = [3, 16], strides = [1, 1]} : vector<3x128xbf16> to vector<3x16xbf16>
    %cst_46 = arith.constant dense<0.000000e+00> : vector<3x64xf32>
    %76 = tpu.matmul %75, %44, %cst_46 {dimension_numbers = #tpu.dot_dimension_numbers<[1], [0], [0], [1], [0, 0, 1, 1], [], []>} : vector<3x16xbf16>, vector<16x64xbf16>, vector<3x64xf32> -> vector<3x64xf32>
    %77 = arith.truncf %76 : vector<3x64xf32> to vector<3x64xbf16>
    %c0_47 = arith.constant 0 : index
    %c0_48 = arith.constant 0 : index
    %c5 = arith.constant 5 : index
    %c0_49 = arith.constant 0 : index
    %78 = vector.load %arg7[%c0_47, %c0_48, %c5, %c0_49] : memref<1x3x8x64xbf16, #tpu.memory_space<vmem>>, vector<1x3x1x64xbf16>
    %79 = vector.shape_cast %78 : vector<1x3x1x64xbf16> to vector<3x64xbf16>
    %80 = vector.shape_cast %77 : vector<3x64xbf16> to vector<1x3x1x64xbf16>
    tpu.vector_store %arg7[%c0_47, %c0_48, %c5, %c0_49], %80 {strides = array<i32>} : memref<1x3x8x64xbf16, #tpu.memory_space<vmem>>, vector<1x3x1x64xbf16>,
    %81 = vector.extract_strided_slice %43 {offsets = [0, 96], sizes = [3, 16], strides = [1, 1]} : vector<3x128xbf16> to vector<3x16xbf16>
    %cst_50 = arith.constant dense<0.000000e+00> : vector<3x64xf32>
    %82 = tpu.matmul %81, %44, %cst_50 {dimension_numbers = #tpu.dot_dimension_numbers<[1], [0], [0], [1], [0, 0, 1, 1], [], []>} : vector<3x16xbf16>, vector<16x64xbf16>, vector<3x64xf32> -> vector<3x64xf32>
    %83 = arith.truncf %82 : vector<3x64xf32> to vector<3x64xbf16>
    %c0_51 = arith.constant 0 : index
    %c0_52 = arith.constant 0 : index
    %c6 = arith.constant 6 : index
    %c0_53 = arith.constant 0 : index
    %84 = vector.load %arg7[%c0_51, %c0_52, %c6, %c0_53] : memref<1x3x8x64xbf16, #tpu.memory_space<vmem>>, vector<1x3x1x64xbf16>
    %85 = vector.shape_cast %84 : vector<1x3x1x64xbf16> to vector<3x64xbf16>
    %86 = vector.shape_cast %83 : vector<3x64xbf16> to vector<1x3x1x64xbf16>
    tpu.vector_store %arg7[%c0_51, %c0_52, %c6, %c0_53], %86 {strides = array<i32>} : memref<1x3x8x64xbf16, #tpu.memory_space<vmem>>, vector<1x3x1x64xbf16>,
    %87 = vector.extract_strided_slice %43 {offsets = [0, 112], sizes = [3, 16], strides = [1, 1]} : vector<3x128xbf16> to vector<3x16xbf16>
    %cst_54 = arith.constant dense<0.000000e+00> : vector<3x64xf32>
    %88 = tpu.matmul %87, %44, %cst_54 {dimension_numbers = #tpu.dot_dimension_numbers<[1], [0], [0], [1], [0, 0, 1, 1], [], []>} : vector<3x16xbf16>, vector<16x64xbf16>, vector<3x64xf32> -> vector<3x64xf32>
    %89 = arith.truncf %88 : vector<3x64xf32> to vector<3x64xbf16>
    %c0_55 = arith.constant 0 : index
    %c0_56 = arith.constant 0 : index
    %c7 = arith.constant 7 : index
    %c0_57 = arith.constant 0 : index
    %90 = vector.load %arg7[%c0_55, %c0_56, %c7, %c0_57] : memref<1x3x8x64xbf16, #tpu.memory_space<vmem>>, vector<1x3x1x64xbf16>
    %91 = vector.shape_cast %90 : vector<1x3x1x64xbf16> to vector<3x64xbf16>
    %92 = vector.shape_cast %89 : vector<3x64xbf16> to vector<1x3x1x64xbf16>
    tpu.vector_store %arg7[%c0_55, %c0_56, %c7, %c0_57], %92 {strides = array<i32>} : memref<1x3x8x64xbf16, #tpu.memory_space<vmem>>, vector<1x3x1x64xbf16>,
    return
  }
  func.func @transform_0(%arg0: i32, %arg1: i32) -> (i32, i32, i32, i32) {
    %c0_i32 = arith.constant 0 : i32
    %c0_i32_0 = arith.constant 0 : i32
    %c0_i32_1 = arith.constant 0 : i32
    %c0_i32_2 = arith.constant 0 : i32
    return %arg0, %c0_i32, %c0_i32_0, %c0_i32_1 : i32, i32, i32, i32
  }
  func.func @transform_1(%arg0: i32, %arg1: i32) -> (i32, i32) {
    %c0_i32 = arith.constant 0 : i32
    %c0_i32_0 = arith.constant 0 : i32
    %c0_i32_1 = arith.constant 0 : i32
    return %c0_i32, %c0_i32_0 : i32, i32
  }
  func.func @transform_2(%arg0: i32, %arg1: i32) -> (i32, i32) {
    %c0_i32 = arith.constant 0 : i32
    %c0_i32_0 = arith.constant 0 : i32
    %c0_i32_1 = arith.constant 0 : i32
    return %c0_i32, %c0_i32_0 : i32, i32
  }
  func.func @transform_3(%arg0: i32, %arg1: i32) -> (i32, i32) {
    %c0_i32 = arith.constant 0 : i32
    %c0_i32_0 = arith.constant 0 : i32
    %c0_i32_1 = arith.constant 0 : i32
    return %c0_i32, %c0_i32_0 : i32, i32
  }
  func.func @transform_4(%arg0: i32, %arg1: i32) -> (i32, i32) {
    %c0_i32 = arith.constant 0 : i32
    %c0_i32_0 = arith.constant 0 : i32
    %c0_i32_1 = arith.constant 0 : i32
    return %c0_i32, %c0_i32_0 : i32, i32
  }
  func.func @transform_5(%arg0: i32, %arg1: i32) -> (i32, i32, i32, i32) {
    %c0_i32 = arith.constant 0 : i32
    %c0_i32_0 = arith.constant 0 : i32
    %c0_i32_1 = arith.constant 0 : i32
    return %arg0, %c0_i32, %arg1, %c0_i32_0 : i32, i32, i32, i32
  }
}

</mosaic_0001>

<llo_original>
// kernel: tpu_custom_call.1
$region0: #{tpu_custom_call.1}
  #allocation0 [shape = 'u32[]', space=smem, size = 0x4, offset = 0x4, fixed_abs, tag = 'smem constant byte address 0x4 - core index']
  #allocation1 [shape = 'u32[144,128]{1,0:T(1,128)}', space=vmem, size = 0x12000, scoped, tag = 'internal scratch']
  #allocation2 [shape = 'bf16[128,36]{1,0:T(8,128)(2,1)}', space=vmem, size = 0x8000, scoped, tag = 'scratch operand']
  %s0 = inlined_call_operand.vmem [shape: bf16[2,18,18,4], index: 0, kind: input, shape index: {}]
  %s1 = inlined_call_operand.vmem [shape: bf16[36,8], index: 1, kind: input, shape index: {}]
  %s2 = inlined_call_operand.vmem [shape: f32[1,8], index: 2, kind: input, shape index: {}]
  %s3 = inlined_call_operand.vmem [shape: bf16[3,8], index: 3, kind: input, shape index: {}]
  %s4 = inlined_call_operand.vmem [shape: bf16[16,64], index: 4, kind: input, shape index: {}]
  %s5 = inlined_call_operand.hbm [shape: bf16[2,3,16,64], index: 5, kind: output, shape index: {}]
  %s6 = sld [smem:[#allocation0]]
  $region53: #{tpu_custom_call.1} parent=0
    _
  %s8 = ssub.s32 1, %s6
  %s9 = scalar_select 0, %s8, %s6
  $region1: #{tpu_custom_call.1} parent=0
    #allocation3 [shape = 'u8[12288]{0}', space=vmem, size = 0x3000, scoped, tag = 'output window, operand 0']
    #allocation4 [shape = 's32[2]{0}', space=sflag, size = 0x8, scoped, tag = 'scoped memory for tpu_custom_call.1']
    %10 = vsyncpa [#allocation4], 0
    %s11 = scalar_lea.sflag [#allocation4], 1
    %12 = vsyncpa %s11, 0
    loop: start=0, step=1, limit=6
    $region2: #{tpu_custom_call.1} parent=1 // loop_pre_header
      _
    $region3: #{tpu_custom_call.1} parent=1 // loop_header
      %s14 = sphi 0, %s18
      %p15 = scmp.ge.s32.totalorder %s14, 6
      %s21 = sphi 0, %s33
      %s22 = sphi 0, %s29
      %s23 = sphi 0, %s21
      %s24 = sphi 0, %s22
      %s25 = sphi 0, %s23
      %s26 = sphi 0, %s24
      %s36 = sphi 0, %s38
      %s39 = sphi 0, %s36
      %s40 = sphi 0, %s39
      %s56 = sphi 0, %s40
      %s60 = sphi 0, %s60
      %s62 = sphi 0, %s60
      %s63 = sphi 0, %s62
      %s77 = sphi 0, %s63
      %s81 = sphi 0, %s81
      %s83 = sphi 0, %s81
      %s84 = sphi 0, %s83
      %s98 = sphi 0, %s84
      %s102 = sphi 0, %s102
      %s104 = sphi 0, %s102
      %s105 = sphi 0, %s104
      %s119 = sphi 0, %s105
      %s123 = sphi 0, %s123
      %s125 = sphi 0, %s123
      %s126 = sphi 0, %s125
      %s140 = sphi 0, %s126
      %s148 = sphi 0, %s150
      %s151 = sphi 0, %s148
      %s152 = sphi 0, %s151
      %s168 = sphi 0, %s152
    $region4: #{tpu_custom_call.1} parent=1 // loop_header_branch
      %17 = sbr.rel (%p15) target = $region8
    $region5: #{tpu_custom_call.1} parent=1 // loop_body
      %s19 = ssub.s32 %s14, 1
      %s20 = ssub.s32 %s14, 2
      %s27 = sadd.s32 1, %s22
      %p28 = scmp.ge.s32.totalorder %s27, 2
      %s29 = scalar_select %p28, 0, %s27
      %s30 = sadd.s32 1, %s21
      %s31 = scalar_select %p28, %s30, %s21
      %p32 = scmp.ge.s32.totalorder %s31, 2
      %s33 = scalar_select %p32, 0, %s31
      %s34 = ssub.s32 %s21, %s33
      %p35 = scmp.eq.s32.totalorder %s34, 0
      %s37 = sadd.s32 %s36, 1
      %s38 = scalar_select %p35, %s36, %s37
      %p41 = pneg %p35
      %p42 = scmp.eq.s32.totalorder %s14, 3
      %p43 = por %p41, %p42
      %p44 = scmp.ne.s32.totalorder %s36, %s39
      %p45 = scmp.eq.s32.totalorder %s14, 0
      %p46 = por %p44, %p45
      %p47 = scmp.ne.s32.totalorder %s36, %s39
      %p48 = scmp.eq.s32.totalorder %s19, 3
      %p49 = por %p47, %p48
      %p50 = scmp.ne.s32.totalorder %s39, %s40
      %p51 = scmp.eq.s32.totalorder %s19, 0
      %p52 = por %p50, %p51
      %p53 = scmp.ne.s32.totalorder %s39, %s40
      %p54 = scmp.eq.s32.totalorder %s20, 3
      %p55 = por %p53, %p54
      %p57 = scmp.ne.s32.totalorder %s40, %s56
      %p58 = scmp.eq.s32.totalorder %s20, 0
      %p59 = por %p57, %p58
      %s61 = sadd.s32 %s60, 1
      %p64 = scmp.eq.s32.totalorder %s14, 3
      %p65 = scmp.ne.s32.totalorder %s60, %s62
      %p66 = scmp.eq.s32.totalorder %s14, 0
      %p67 = por %p65, %p66
      %p68 = scmp.ne.s32.totalorder %s60, %s62
      %p69 = scmp.eq.s32.totalorder %s19, 3
      %p70 = por %p68, %p69
      %p71 = scmp.ne.s32.totalorder %s62, %s63
      %p72 = scmp.eq.s32.totalorder %s19, 0
      %p73 = por %p71, %p72
      %p74 = scmp.ne.s32.totalorder %s62, %s63
      %p75 = scmp.eq.s32.totalorder %s20, 3
      %p76 = por %p74, %p75
      %p78 = scmp.ne.s32.totalorder %s63, %s77
      %p79 = scmp.eq.s32.totalorder %s20, 0
      %p80 = por %p78, %p79
      %s82 = sadd.s32 %s81, 1
      %p85 = scmp.eq.s32.totalorder %s14, 3
      %p86 = scmp.ne.s32.totalorder %s81, %s83
      %p87 = scmp.eq.s32.totalorder %s14, 0
      %p88 = por %p86, %p87
      %p89 = scmp.ne.s32.totalorder %s81, %s83
      %p90 = scmp.eq.s32.totalorder %s19, 3
      %p91 = por %p89, %p90
      %p92 = scmp.ne.s32.totalorder %s83, %s84
      %p93 = scmp.eq.s32.totalorder %s19, 0
      %p94 = por %p92, %p93
      %p95 = scmp.ne.s32.totalorder %s83, %s84
      %p96 = scmp.eq.s32.totalorder %s20, 3
      %p97 = por %p95, %p96
      %p99 = scmp.ne.s32.totalorder %s84, %s98
      %p100 = scmp.eq.s32.totalorder %s20, 0
      %p101 = por %p99, %p100
      %s103 = sadd.s32 %s102, 1
      %p106 = scmp.eq.s32.totalorder %s14, 3
      %p107 = scmp.ne.s32.totalorder %s102, %s104
      %p108 = scmp.eq.s32.totalorder %s14, 0
      %p109 = por %p107, %p108
      %p110 = scmp.ne.s32.totalorder %s102, %s104
      %p111 = scmp.eq.s32.totalorder %s19, 3
      %p112 = por %p110, %p111
      %p113 = scmp.ne.s32.totalorder %s104, %s105
      %p114 = scmp.eq.s32.totalorder %s19, 0
      %p115 = por %p113, %p114
      %p116 = scmp.ne.s32.totalorder %s104, %s105
      %p117 = scmp.eq.s32.totalorder %s20, 3
      %p118 = por %p116, %p117
      %p120 = scmp.ne.s32.totalorder %s105, %s119
      %p121 = scmp.eq.s32.totalorder %s20, 0
      %p122 = por %p120, %p121
      %s124 = sadd.s32 %s123, 1
      %p127 = scmp.eq.s32.totalorder %s14, 3
      %p128 = scmp.ne.s32.totalorder %s123, %s125
      %p129 = scmp.eq.s32.totalorder %s14, 0
      %p130 = por %p128, %p129
      %p131 = scmp.ne.s32.totalorder %s123, %s125
      %p132 = scmp.eq.s32.totalorder %s19, 3
      %p133 = por %p131, %p132
      %p134 = scmp.ne.s32.totalorder %s125, %s126
      %p135 = scmp.eq.s32.totalorder %s19, 0
      %p136 = por %p134, %p135
      %p137 = scmp.ne.s32.totalorder %s125, %s126
      %p138 = scmp.eq.s32.totalorder %s20, 3
      %p139 = por %p137, %p138
      %p141 = scmp.ne.s32.totalorder %s126, %s140
      %p142 = scmp.eq.s32.totalorder %s20, 0
      %p143 = por %p141, %p142
      %s144 = ssub.s32 %s21, %s33
      %s145 = ssub.s32 %s22, %s29
      %s146 = sor.u32 %s144, %s145
      %p147 = scmp.eq.s32.totalorder %s146, 0
      %s149 = sadd.s32 %s148, 1
      %s150 = scalar_select %p147, %s148, %s149
      %p153 = pneg %p147
      %p154 = scmp.eq.s32.totalorder %s14, 3
      %p155 = por %p153, %p154
      %p156 = scmp.ne.s32.totalorder %s148, %s151
      %p157 = scmp.eq.s32.totalorder %s14, 0
      %p158 = por %p156, %p157
      %p159 = scmp.ne.s32.totalorder %s148, %s151
      %p160 = scmp.eq.s32.totalorder %s19, 3
      %p161 = por %p159, %p160
      %p162 = scmp.ne.s32.totalorder %s151, %s152
      %p163 = scmp.eq.s32.totalorder %s19, 0
      %p164 = por %p162, %p163
      %p165 = scmp.ne.s32.totalorder %s151, %s152
      %p166 = scmp.eq.s32.totalorder %s20, 3
      %p167 = por %p165, %p166
      %p169 = scmp.ne.s32.totalorder %s152, %s168
      %p170 = scmp.eq.s32.totalorder %s20, 0
      %p171 = por %p169, %p170
      %p172 = scmp.le.s32.totalorder 1, %s14
      %p173 = scmp.lt.s32.totalorder %s14, 5
      %p174 = pnand %p172, %p173
      %p175 = pneg %p174
      // Predicated region
      $region9: #{tpu_custom_call.1} parent=5 // pred_check
        _
      $region10: #{tpu_custom_call.1} parent=5 // pred_check_branch
        %177 = sbr.rel (%p174) target = $region12
      $region11: #{tpu_custom_call.1} parent=5 // pred_region
        %s178 = ssub.s32 %s14, 1
        // Predicated region
        $region13: #{tpu_custom_call.1} parent=11 // pred_check
          %p179 = pneg %p73
        $region14: #{tpu_custom_call.1} parent=11 // pred_check_branch
          %181 = sbr.rel (%p179) target = $region16
        $region15: #{tpu_custom_call.1} parent=11 // pred_region
          _
        $region16: #{tpu_custom_call.1} parent=11 // pred_fallthru
          _
        // Predicated region
        $region17: #{tpu_custom_call.1} parent=11 // pred_check
          %p182 = pneg %p94
        $region18: #{tpu_custom_call.1} parent=11 // pred_check_branch
          %184 = sbr.rel (%p182) target = $region20
        $region19: #{tpu_custom_call.1} parent=11 // pred_region
          _
        $region20: #{tpu_custom_call.1} parent=11 // pred_fallthru
          _
        // Predicated region
        $region21: #{tpu_custom_call.1} parent=11 // pred_check
          %p185 = pneg %p115
        $region22: #{tpu_custom_call.1} parent=11 // pred_check_branch
          %187 = sbr.rel (%p185) target = $region24
        $region23: #{tpu_custom_call.1} parent=11 // pred_region
          _
        $region24: #{tpu_custom_call.1} parent=11 // pred_fallthru
          _
        // Predicated region
        $region25: #{tpu_custom_call.1} parent=11 // pred_check
          %p188 = pneg %p136
        $region26: #{tpu_custom_call.1} parent=11 // pred_check_branch
          %190 = sbr.rel (%p188) target = $region28
        $region27: #{tpu_custom_call.1} parent=11 // pred_region
          _
        $region28: #{tpu_custom_call.1} parent=11 // pred_fallthru
          _
      $region12: #{tpu_custom_call.1} parent=5 // pred_fallthru
        _
      %p191 = scmp.lt.s32.totalorder %s14, 4
      // Predicated region
      $region29: #{tpu_custom_call.1} parent=5 // pred_check
        %p192 = pneg %p191
      $region30: #{tpu_custom_call.1} parent=5 // pred_check_branch
        %194 = sbr.rel (%p192) target = $region32
      $region31: #{tpu_custom_call.1} parent=5 // pred_region
        // Predicated region
        $region33: #{tpu_custom_call.1} parent=31 // pred_check
          %p195 = pneg %p46
        $region34: #{tpu_custom_call.1} parent=31 // pred_check_branch
          %197 = sbr.rel (%p195) target = $region36
        $region35: #{tpu_custom_call.1} parent=31 // pred_region
          %p198 = scmp.lt.s32.totalorder %s21, 1
          %s199 = scalar_select %p198, %s21, 1
          %s200 = smul.addr %s199, 54
          %s201 = smul.addr %s200, 4
          %s202 = scalar_lea.vmem %s0, %s201
        $region36: #{tpu_custom_call.1} parent=31 // pred_fallthru
          _
      $region32: #{tpu_custom_call.1} parent=5 // pred_fallthru
        _
      %p203 = scmp.le.s32.totalorder 1, %s14
      %p204 = scmp.lt.s32.totalorder %s14, 5
      %p205 = pnand %p203, %p204
      %p206 = pneg %p205
      // Predicated region
      $region37: #{tpu_custom_call.1} parent=5 // pred_check
        _
      $region38: #{tpu_custom_call.1} parent=5 // pred_check_branch
        %208 = sbr.rel (%p205) target = $region40
      $region39: #{tpu_custom_call.1} parent=5 // pred_region
        %s209 = ssub.s32 %s14, 1
        %p210 = scmp.lt.s32.totalorder %s23, 1
        %s211 = scalar_select %p210, %s23, 1
        %s212 = smul.addr %s211, 54
        %s213 = smul.addr %s212, 4
        %s214 = scalar_lea.vmem %s0, %s213
        %p215 = pneg %p52
        %p216 = pneg %p49
        %p217 = pneg %p73
        %p218 = pneg %p70
        %p219 = pneg %p94
        %p220 = pneg %p91
        %p221 = pneg %p115
        %p222 = pneg %p112
        %p223 = pneg %p136
        %p224 = pneg %p133
        %p225 = pneg %p164
        %p226 = pneg %p161
        %s227 = sand.u32 %s151, 1
        %s228 = scalar_lea.sflag [#allocation4], %s227
        %s229 = sand.u32 %s151, 1
        %s230 = smul.addr %s229, 12
        %s231 = scalar_lea.vmem [#allocation3], %s230
        %p232 = scmp.lt.s32.totalorder %s23, 1
        %s233 = scalar_select %p232, %s23, 1
        %s234 = smul.addr %s233, 54
        %s235 = smul.addr %s234, 4
        %s236 = scalar_lea.vmem %s0, %s235
        %s238 = smul.u32 %s24, 8
        %s239 = smul.u32 %s238, 3
        %s240 = smul.addr %s239, 4
        %s241 = scalar_lea.vmem %s236, %s240
        %v242 = vld [vmem:[%s241] sm:$0xf]
        %v243 = vld [vmem:[%s241 + $0x4] sm:$0xf]
        %v244 = vld [vmem:[%s241 + $0x8] sm:$0x1]
        %v245 = vld [vmem:[%s241 + $0xc] sm:$0xf]
        %v246 = vld [vmem:[%s241 + $0x10] sm:$0xf]
        %v247 = vld [vmem:[%s241 + $0x14] sm:$0x1]
        %v248 = vld [vmem:[%s241 + $0x18] sm:$0xf]
        %v249 = vld [vmem:[%s241 + $0x1c] sm:$0xf]
        %v250 = vld [vmem:[%s241 + $0x20] sm:$0x1]
        %v251 = vld [vmem:[%s241 + $0x24] sm:$0xf]
        %v252 = vld [vmem:[%s241 + $0x28] sm:$0xf]
        %v253 = vld [vmem:[%s241 + $0x2c] sm:$0x1]
        %v254 = vld [vmem:[%s241 + $0x30] sm:$0xf]
        %v255 = vld [vmem:[%s241 + $0x34] sm:$0xf]
        %v256 = vld [vmem:[%s241 + $0x38] sm:$0x1]
        %v257 = vld [vmem:[%s241 + $0x3c] sm:$0xf]
        %v258 = vld [vmem:[%s241 + $0x40] sm:$0xf]
        %v259 = vld [vmem:[%s241 + $0x44] sm:$0x1]
        %v260 = vld [vmem:[%s241 + $0x48] sm:$0xf]
        %v261 = vld [vmem:[%s241 + $0x4c] sm:$0xf]
        %v262 = vld [vmem:[%s241 + $0x50] sm:$0x1]
        %v263 = vld [vmem:[%s241 + $0x54] sm:$0xf]
        %v264 = vld [vmem:[%s241 + $0x58] sm:$0xf]
        %v265 = vld [vmem:[%s241 + $0x5c] sm:$0x1]
        %v266 = vld [vmem:[%s241 + $0x60] sm:$0xf]
        %v267 = vld [vmem:[%s241 + $0x64] sm:$0xf]
        %v268 = vld [vmem:[%s241 + $0x68] sm:$0x1]
        %v269 = vld [vmem:[%s241 + $0x6c] sm:$0xf]
        %v270 = vld [vmem:[%s241 + $0x70] sm:$0xf]
        %v271 = vld [vmem:[%s241 + $0x74] sm:$0x1]
        %vm272 = vcmask 27648
        %273 = vst.msk [vmem:[#allocation2] sm:$0xf] %vm272, %v242
        %274 = vst.msk [vmem:[#allocation2 + $0x4] sm:$0xf] %vm272, %v243
        %275 = vst.msk [vmem:[#allocation2 + $0x8] sm:$0xf] %vm272, %v245
        %276 = vst.msk [vmem:[#allocation2 + $0xc] sm:$0xf] %vm272, %v246
        %277 = vst.msk [vmem:[#allocation2 + $0x10] sm:$0xf] %vm272, %v248
        %278 = vst.msk [vmem:[#allocation2 + $0x14] sm:$0xf] %vm272, %v249
        %279 = vst.msk [vmem:[#allocation2 + $0x18] sm:$0xf] %vm272, %v251
        %280 = vst.msk [vmem:[#allocation2 + $0x1c] sm:$0xf] %vm272, %v252
        %281 = vst.msk [vmem:[#allocation2 + $0x20] sm:$0xf] %vm272, %v254
        %282 = vst.msk [vmem:[#allocation2 + $0x24] sm:$0xf] %vm272, %v255
        %283 = vst.msk [vmem:[#allocation2 + $0x28] sm:$0xf] %vm272, %v257
        %284 = vst.msk [vmem:[#allocation2 + $0x2c] sm:$0xf] %vm272, %v258
        %285 = vst.msk [vmem:[#allocation2 + $0x30] sm:$0xf] %vm272, %v260
        %286 = vst.msk [vmem:[#allocation2 + $0x34] sm:$0xf] %vm272, %v261
        %287 = vst.msk [vmem:[#allocation2 + $0x38] sm:$0xf] %vm272, %v263
        %288 = vst.msk [vmem:[#allocation2 + $0x3c] sm:$0xf] %vm272, %v264
        %vm289 = vsmask.f32 3328
        %vm290 = vsmask.f32 7440
        %vm291 = vmor %vm289, %vm290
        %v293 = vshrl.u32 %v242, 16
        %v295 = vrot.slane %v293, 4
        %v296 = vshll.u32 %v242, 16
        %v298 = vrot.slane %v296, 5
        %v299 = vor.u32 %v295, %v298
        %v300 = vrot.slane %v299, 4
        %v302 = vshll.u32 %v243, 16
        %v304 = vrot.slane %v302, 5
        %v305 = vsel %vm291, %v300, %v304
        %v306 = vshrl.u32 %v243, 16
        %v308 = vrot.slane %v306, 4
        %v309 = vor.u32 %v308, %v304
        %v310 = vrot.slane %v309, 4
        %v312 = vshll.u32 %v244, 16
        %v314 = vrot.slane %v312, 5
        %v315 = vsel %vm291, %v310, %v314
        %v317 = vshrl.u32 %v245, 16
        %v319 = vrot.slane %v317, 4
        %v320 = vshll.u32 %v245, 16
        %v322 = vrot.slane %v320, 5
        %v323 = vor.u32 %v319, %v322
        %v324 = vrot.slane %v323, 4
        %v326 = vshll.u32 %v246, 16
        %v328 = vrot.slane %v326, 5
        %v329 = vsel %vm291, %v324, %v328
        %v330 = vshrl.u32 %v246, 16
        %v332 = vrot.slane %v330, 4
        %v333 = vor.u32 %v332, %v328
        %v334 = vrot.slane %v333, 4
        %v336 = vshll.u32 %v247, 16
        %v338 = vrot.slane %v336, 5
        %v339 = vsel %vm291, %v334, %v338
        %v341 = vshrl.u32 %v248, 16
        %v343 = vrot.slane %v341, 4
        %v344 = vshll.u32 %v248, 16
        %v346 = vrot.slane %v344, 5
        %v347 = vor.u32 %v343, %v346
        %v348 = vrot.slane %v347, 4
        %v350 = vshll.u32 %v249, 16
        %v352 = vrot.slane %v350, 5
        %v353 = vsel %vm291, %v348, %v352
        %v354 = vshrl.u32 %v249, 16
        %v356 = vrot.slane %v354, 4
        %v357 = vor.u32 %v356, %v352
        %v358 = vrot.slane %v357, 4
        %v360 = vshll.u32 %v250, 16
        %v362 = vrot.slane %v360, 5
        %v363 = vsel %vm291, %v358, %v362
        %v365 = vshrl.u32 %v251, 16
        %v367 = vrot.slane %v365, 4
        %v368 = vshll.u32 %v251, 16
        %v370 = vrot.slane %v368, 5
        %v371 = vor.u32 %v367, %v370
        %v372 = vrot.slane %v371, 4
        %v374 = vshll.u32 %v252, 16
        %v376 = vrot.slane %v374, 5
        %v377 = vsel %vm291, %v372, %v376
        %v378 = vshrl.u32 %v252, 16
        %v380 = vrot.slane %v378, 4
        %v381 = vor.u32 %v380, %v376
        %v382 = vrot.slane %v381, 4
        %v384 = vshll.u32 %v253, 16
        %v386 = vrot.slane %v384, 5
        %v387 = vsel %vm291, %v382, %v386
        %v389 = vshrl.u32 %v254, 16
        %v391 = vrot.slane %v389, 4
        %v392 = vshll.u32 %v254, 16
        %v394 = vrot.slane %v392, 5
        %v395 = vor.u32 %v391, %v394
        %v396 = vrot.slane %v395, 4
        %v398 = vshll.u32 %v255, 16
        %v400 = vrot.slane %v398, 5
        %v401 = vsel %vm291, %v396, %v400
        %v402 = vshrl.u32 %v255, 16
        %v404 = vrot.slane %v402, 4
        %v405 = vor.u32 %v404, %v400
        %v406 = vrot.slane %v405, 4
        %v408 = vshll.u32 %v256, 16
        %v410 = vrot.slane %v408, 5
        %v411 = vsel %vm291, %v406, %v410
        %v413 = vshrl.u32 %v257, 16
        %v415 = vrot.slane %v413, 4
        %v416 = vshll.u32 %v257, 16
        %v418 = vrot.slane %v416, 5
        %v419 = vor.u32 %v415, %v418
        %v420 = vrot.slane %v419, 4
        %v422 = vshll.u32 %v258, 16
        %v424 = vrot.slane %v422, 5
        %v425 = vsel %vm291, %v420, %v424
        %v426 = vshrl.u32 %v258, 16
        %v428 = vrot.slane %v426, 4
        %v429 = vor.u32 %v428, %v424
        %v430 = vrot.slane %v429, 4
        %v432 = vshll.u32 %v259, 16
        %v434 = vrot.slane %v432, 5
        %v435 = vsel %vm291, %v430, %v434
        %v437 = vshrl.u32 %v260, 16
        %v439 = vrot.slane %v437, 4
        %v440 = vshll.u32 %v260, 16
        %v442 = vrot.slane %v440, 5
        %v443 = vor.u32 %v439, %v442
        %v444 = vrot.slane %v443, 4
        %v446 = vshll.u32 %v261, 16
        %v448 = vrot.slane %v446, 5
        %v449 = vsel %vm291, %v444, %v448
        %v450 = vshrl.u32 %v261, 16
        %v452 = vrot.slane %v450, 4
        %v453 = vor.u32 %v452, %v448
        %v454 = vrot.slane %v453, 4
        %v456 = vshll.u32 %v262, 16
        %v458 = vrot.slane %v456, 5
        %v459 = vsel %vm291, %v454, %v458
        %v461 = vshrl.u32 %v263, 16
        %v463 = vrot.slane %v461, 4
        %v464 = vshll.u32 %v263, 16
        %v466 = vrot.slane %v464, 5
        %v467 = vor.u32 %v463, %v466
        %v468 = vrot.slane %v467, 4
        %v470 = vshll.u32 %v264, 16
        %v472 = vrot.slane %v470, 5
        %v473 = vsel %vm291, %v468, %v472
        %v474 = vshrl.u32 %v264, 16
        %v476 = vrot.slane %v474, 4
        %v477 = vor.u32 %v476, %v472
        %v478 = vrot.slane %v477, 4
        %v480 = vshll.u32 %v265, 16
        %v482 = vrot.slane %v480, 5
        %v483 = vsel %vm291, %v478, %v482
        %484 = vrot.lane.b32.xlu0 %v305, 4
        %v485 = vpop.permute.xlu0 %484
        %486 = vrot.lane.b32.xlu0 %v315, 4
        %v487 = vpop.permute.xlu0 %486
        %488 = vrot.lane.b32.xlu0 %v329, 4
        %v489 = vpop.permute.xlu0 %488
        %490 = vrot.lane.b32.xlu0 %v339, 4
        %v491 = vpop.permute.xlu0 %490
        %492 = vrot.lane.b32.xlu0 %v353, 4
        %v493 = vpop.permute.xlu0 %492
        %494 = vrot.lane.b32.xlu0 %v363, 4
        %v495 = vpop.permute.xlu0 %494
        %496 = vrot.lane.b32.xlu0 %v377, 4
        %v497 = vpop.permute.xlu0 %496
        %498 = vrot.lane.b32.xlu0 %v387, 4
        %v499 = vpop.permute.xlu0 %498
        %500 = vrot.lane.b32.xlu0 %v401, 4
        %v501 = vpop.permute.xlu0 %500
        %502 = vrot.lane.b32.xlu0 %v411, 4
        %v503 = vpop.permute.xlu0 %502
        %504 = vrot.lane.b32.xlu0 %v425, 4
        %v505 = vpop.permute.xlu0 %504
        %506 = vrot.lane.b32.xlu0 %v435, 4
        %v507 = vpop.permute.xlu0 %506
        %508 = vrot.lane.b32.xlu0 %v449, 4
        %v509 = vpop.permute.xlu0 %508
        %510 = vrot.lane.b32.xlu0 %v459, 4
        %v511 = vpop.permute.xlu0 %510
        %512 = vrot.lane.b32.xlu0 %v473, 4
        %v513 = vpop.permute.xlu0 %512
        %514 = vrot.lane.b32.xlu0 %v483, 4
        %v515 = vpop.permute.xlu0 %514
        %vm532 = vcmask 60448
        %533 = vst.msk [vmem:[#allocation2] sm:$0xf] %vm532, %v485
        %534 = vst.msk [vmem:[#allocation2 + $0x4] sm:$0xf] %vm532, %v487
        %535 = vst.msk [vmem:[#allocation2 + $0x8] sm:$0xf] %vm532, %v489
        %536 = vst.msk [vmem:[#allocation2 + $0xc] sm:$0xf] %vm532, %v491
        %537 = vst.msk [vmem:[#allocation2 + $0x10] sm:$0xf] %vm532, %v493
        %538 = vst.msk [vmem:[#allocation2 + $0x14] sm:$0xf] %vm532, %v495
        %539 = vst.msk [vmem:[#allocation2 + $0x18] sm:$0xf] %vm532, %v497
        %540 = vst.msk [vmem:[#allocation2 + $0x1c] sm:$0xf] %vm532, %v499
        %541 = vst.msk [vmem:[#allocation2 + $0x20] sm:$0xf] %vm532, %v501
        %542 = vst.msk [vmem:[#allocation2 + $0x24] sm:$0xf] %vm532, %v503
        %543 = vst.msk [vmem:[#allocation2 + $0x28] sm:$0xf] %vm532, %v505
        %544 = vst.msk [vmem:[#allocation2 + $0x2c] sm:$0xf] %vm532, %v507
        %545 = vst.msk [vmem:[#allocation2 + $0x30] sm:$0xf] %vm532, %v509
        %546 = vst.msk [vmem:[#allocation2 + $0x34] sm:$0xf] %vm532, %v511
        %547 = vst.msk [vmem:[#allocation2 + $0x38] sm:$0xf] %vm532, %v513
        %548 = vst.msk [vmem:[#allocation2 + $0x3c] sm:$0xf] %vm532, %v515
        %vm573 = vcmask 1042432
        %vm574 = vcmask 1046532
        %vm575 = vmor %vm573, %vm574
        %v576 = vrot.slane %v242, 5
        %v577 = vrot.slane %v576, 4
        %v578 = vrot.slane %v243, 5
        %v579 = vsel %vm575, %v577, %v578
        %v580 = vrot.slane %v578, 4
        %v581 = vrot.slane %v244, 5
        %v582 = vsel %vm575, %v580, %v581
        %v583 = vrot.slane %v245, 5
        %v584 = vrot.slane %v583, 4
        %v585 = vrot.slane %v246, 5
        %v586 = vsel %vm575, %v584, %v585
        %v587 = vrot.slane %v585, 4
        %v588 = vrot.slane %v247, 5
        %v589 = vsel %vm575, %v587, %v588
        %v590 = vrot.slane %v248, 5
        %v591 = vrot.slane %v590, 4
        %v592 = vrot.slane %v249, 5
        %v593 = vsel %vm575, %v591, %v592
        %v594 = vrot.slane %v592, 4
        %v595 = vrot.slane %v250, 5
        %v596 = vsel %vm575, %v594, %v595
        %v597 = vrot.slane %v251, 5
        %v598 = vrot.slane %v597, 4
        %v599 = vrot.slane %v252, 5
        %v600 = vsel %vm575, %v598, %v599
        %v601 = vrot.slane %v599, 4
        %v602 = vrot.slane %v253, 5
        %v603 = vsel %vm575, %v601, %v602
        %v604 = vrot.slane %v254, 5
        %v605 = vrot.slane %v604, 4
        %v606 = vrot.slane %v255, 5
        %v607 = vsel %vm575, %v605, %v606
        %v608 = vrot.slane %v606, 4
        %v609 = vrot.slane %v256, 5
        %v610 = vsel %vm575, %v608, %v609
        %v611 = vrot.slane %v257, 5
        %v612 = vrot.slane %v611, 4
        %v613 = vrot.slane %v258, 5
        %v614 = vsel %vm575, %v612, %v613
        %v615 = vrot.slane %v613, 4
        %v616 = vrot.slane %v259, 5
        %v617 = vsel %vm575, %v615, %v616
        %v618 = vrot.slane %v260, 5
        %v619 = vrot.slane %v618, 4
        %v620 = vrot.slane %v261, 5
        %v621 = vsel %vm575, %v619, %v620
        %v622 = vrot.slane %v620, 4
        %v623 = vrot.slane %v262, 5
        %v624 = vsel %vm575, %v622, %v623
        %v625 = vrot.slane %v263, 5
        %v626 = vrot.slane %v625, 4
        %v627 = vrot.slane %v264, 5
        %v628 = vsel %vm575, %v626, %v627
        %v629 = vrot.slane %v627, 4
        %v630 = vrot.slane %v265, 5
        %v631 = vsel %vm575, %v629, %v630
        %632 = vrot.lane.b32.xlu0 %v579, 8
        %v633 = vpop.permute.xlu0 %632
        %634 = vrot.lane.b32.xlu0 %v582, 8
        %v635 = vpop.permute.xlu0 %634
        %636 = vrot.lane.b32.xlu0 %v586, 8
        %v637 = vpop.permute.xlu0 %636
        %638 = vrot.lane.b32.xlu0 %v589, 8
        %v639 = vpop.permute.xlu0 %638
        %640 = vrot.lane.b32.xlu0 %v593, 8
        %v641 = vpop.permute.xlu0 %640
        %642 = vrot.lane.b32.xlu0 %v596, 8
        %v643 = vpop.permute.xlu0 %642
        %644 = vrot.lane.b32.xlu0 %v600, 8
        %v645 = vpop.permute.xlu0 %644
        %646 = vrot.lane.b32.xlu0 %v603, 8
        %v647 = vpop.permute.xlu0 %646
        %648 = vrot.lane.b32.xlu0 %v607, 8
        %v649 = vpop.permute.xlu0 %648
        %650 = vrot.lane.b32.xlu0 %v610, 8
        %v651 = vpop.permute.xlu0 %650
        %652 = vrot.lane.b32.xlu0 %v614, 8
        %v653 = vpop.permute.xlu0 %652
        %654 = vrot.lane.b32.xlu0 %v617, 8
        %v655 = vpop.permute.xlu0 %654
        %656 = vrot.lane.b32.xlu0 %v621, 8
        %v657 = vpop.permute.xlu0 %656
        %658 = vrot.lane.b32.xlu0 %v624, 8
        %v659 = vpop.permute.xlu0 %658
        %660 = vrot.lane.b32.xlu0 %v628, 8
        %v661 = vpop.permute.xlu0 %660
        %662 = vrot.lane.b32.xlu0 %v631, 8
        %v663 = vpop.permute.xlu0 %662
        %vm680 = vcmask 93248
        %681 = vst.msk [vmem:[#allocation2] sm:$0xf] %vm680, %v633
        %682 = vst.msk [vmem:[#allocation2 + $0x4] sm:$0xf] %vm680, %v635
        %683 = vst.msk [vmem:[#allocation2 + $0x8] sm:$0xf] %vm680, %v637
        %684 = vst.msk [vmem:[#allocation2 + $0xc] sm:$0xf] %vm680, %v639
        %685 = vst.msk [vmem:[#allocation2 + $0x10] sm:$0xf] %vm680, %v641
        %686 = vst.msk [vmem:[#allocation2 + $0x14] sm:$0xf] %vm680, %v643
        %687 = vst.msk [vmem:[#allocation2 + $0x18] sm:$0xf] %vm680, %v645
        %688 = vst.msk [vmem:[#allocation2 + $0x1c] sm:$0xf] %vm680, %v647
        %689 = vst.msk [vmem:[#allocation2 + $0x20] sm:$0xf] %vm680, %v649
        %690 = vst.msk [vmem:[#allocation2 + $0x24] sm:$0xf] %vm680, %v651
        %691 = vst.msk [vmem:[#allocation2 + $0x28] sm:$0xf] %vm680, %v653
        %692 = vst.msk [vmem:[#allocation2 + $0x2c] sm:$0xf] %vm680, %v655
        %693 = vst.msk [vmem:[#allocation2 + $0x30] sm:$0xf] %vm680, %v657
        %694 = vst.msk [vmem:[#allocation2 + $0x34] sm:$0xf] %vm680, %v659
        %695 = vst.msk [vmem:[#allocation2 + $0x38] sm:$0xf] %vm680, %v661
        %696 = vst.msk [vmem:[#allocation2 + $0x3c] sm:$0xf] %vm680, %v663
        %699 = vrot.lane.b32.xlu0 %v245, 12
        %v700 = vpop.permute.xlu0 %699
        %701 = vrot.lane.b32.xlu0 %v246, 12
        %v702 = vpop.permute.xlu0 %701
        %703 = vrot.lane.b32.xlu0 %v248, 12
        %v704 = vpop.permute.xlu0 %703
        %705 = vrot.lane.b32.xlu0 %v249, 12
        %v706 = vpop.permute.xlu0 %705
        %707 = vrot.lane.b32.xlu0 %v251, 12
        %v708 = vpop.permute.xlu0 %707
        %709 = vrot.lane.b32.xlu0 %v252, 12
        %v710 = vpop.permute.xlu0 %709
        %711 = vrot.lane.b32.xlu0 %v254, 12
        %v712 = vpop.permute.xlu0 %711
        %713 = vrot.lane.b32.xlu0 %v255, 12
        %v714 = vpop.permute.xlu0 %713
        %715 = vrot.lane.b32.xlu0 %v257, 12
        %v716 = vpop.permute.xlu0 %715
        %717 = vrot.lane.b32.xlu0 %v258, 12
        %v718 = vpop.permute.xlu0 %717
        %719 = vrot.lane.b32.xlu0 %v260, 12
        %v720 = vpop.permute.xlu0 %719
        %721 = vrot.lane.b32.xlu0 %v261, 12
        %v722 = vpop.permute.xlu0 %721
        %723 = vrot.lane.b32.xlu0 %v263, 12
        %v724 = vpop.permute.xlu0 %723
        %725 = vrot.lane.b32.xlu0 %v264, 12
        %v726 = vpop.permute.xlu0 %725
        %727 = vrot.lane.b32.xlu0 %v266, 12
        %v728 = vpop.permute.xlu0 %727
        %729 = vrot.lane.b32.xlu0 %v267, 12
        %v730 = vpop.permute.xlu0 %729
        %vm747 = vcmask 126048
        %748 = vst.msk [vmem:[#allocation2] sm:$0xf] %vm747, %v700
        %749 = vst.msk [vmem:[#allocation2 + $0x4] sm:$0xf] %vm747, %v702
        %750 = vst.msk [vmem:[#allocation2 + $0x8] sm:$0xf] %vm747, %v704
        %751 = vst.msk [vmem:[#allocation2 + $0xc] sm:$0xf] %vm747, %v706
        %752 = vst.msk [vmem:[#allocation2 + $0x10] sm:$0xf] %vm747, %v708
        %753 = vst.msk [vmem:[#allocation2 + $0x14] sm:$0xf] %vm747, %v710
        %754 = vst.msk [vmem:[#allocation2 + $0x18] sm:$0xf] %vm747, %v712
        %755 = vst.msk [vmem:[#allocation2 + $0x1c] sm:$0xf] %vm747, %v714
        %756 = vst.msk [vmem:[#allocation2 + $0x20] sm:$0xf] %vm747, %v716
        %757 = vst.msk [vmem:[#allocation2 + $0x24] sm:$0xf] %vm747, %v718
        %758 = vst.msk [vmem:[#allocation2 + $0x28] sm:$0xf] %vm747, %v720
        %759 = vst.msk [vmem:[#allocation2 + $0x2c] sm:$0xf] %vm747, %v722
        %760 = vst.msk [vmem:[#allocation2 + $0x30] sm:$0xf] %vm747, %v724
        %761 = vst.msk [vmem:[#allocation2 + $0x34] sm:$0xf] %vm747, %v726
        %762 = vst.msk [vmem:[#allocation2 + $0x38] sm:$0xf] %vm747, %v728
        %763 = vst.msk [vmem:[#allocation2 + $0x3c] sm:$0xf] %vm747, %v730
        %v765 = vshrl.u32 %v266, 16
        %v767 = vrot.slane %v765, 4
        %v768 = vshll.u32 %v266, 16
        %v770 = vrot.slane %v768, 5
        %v771 = vor.u32 %v767, %v770
        %v772 = vrot.slane %v771, 4
        %v774 = vshll.u32 %v267, 16
        %v776 = vrot.slane %v774, 5
        %v777 = vsel %vm291, %v772, %v776
        %v778 = vshrl.u32 %v267, 16
        %v780 = vrot.slane %v778, 4
        %v781 = vor.u32 %v780, %v776
        %v782 = vrot.slane %v781, 4
        %v784 = vshll.u32 %v268, 16
        %v786 = vrot.slane %v784, 5
        %v787 = vsel %vm291, %v782, %v786
        %788 = vrot.lane.b32.xlu0 %v329, 16
        %v789 = vpop.permute.xlu0 %788
        %790 = vrot.lane.b32.xlu0 %v339, 16
        %v791 = vpop.permute.xlu0 %790
        %792 = vrot.lane.b32.xlu0 %v353, 16
        %v793 = vpop.permute.xlu0 %792
        %794 = vrot.lane.b32.xlu0 %v363, 16
        %v795 = vpop.permute.xlu0 %794
        %796 = vrot.lane.b32.xlu0 %v377, 16
        %v797 = vpop.permute.xlu0 %796
        %798 = vrot.lane.b32.xlu0 %v387, 16
        %v799 = vpop.permute.xlu0 %798
        %800 = vrot.lane.b32.xlu0 %v401, 16
        %v801 = vpop.permute.xlu0 %800
        %802 = vrot.lane.b32.xlu0 %v411, 16
        %v803 = vpop.permute.xlu0 %802
        %804 = vrot.lane.b32.xlu0 %v425, 16
        %v805 = vpop.permute.xlu0 %804
        %806 = vrot.lane.b32.xlu0 %v435, 16
        %v807 = vpop.permute.xlu0 %806
        %808 = vrot.lane.b32.xlu0 %v449, 16
        %v809 = vpop.permute.xlu0 %808
        %810 = vrot.lane.b32.xlu0 %v459, 16
        %v811 = vpop.permute.xlu0 %810
        %812 = vrot.lane.b32.xlu0 %v473, 16
        %v813 = vpop.permute.xlu0 %812
        %814 = vrot.lane.b32.xlu0 %v483, 16
        %v815 = vpop.permute.xlu0 %814
        %816 = vrot.lane.b32.xlu0 %v777, 16
        %v817 = vpop.permute.xlu0 %816
        %818 = vrot.lane.b32.xlu0 %v787, 16
        %v819 = vpop.permute.xlu0 %818
        %vm836 = vcmask 158848
        %837 = vst.msk [vmem:[#allocation2] sm:$0xf] %vm836, %v789
        %838 = vst.msk [vmem:[#allocation2 + $0x4] sm:$0xf] %vm836, %v791
        %839 = vst.msk [vmem:[#allocation2 + $0x8] sm:$0xf] %vm836, %v793
        %840 = vst.msk [vmem:[#allocation2 + $0xc] sm:$0xf] %vm836, %v795
        %841 = vst.msk [vmem:[#allocation2 + $0x10] sm:$0xf] %vm836, %v797
        %842 = vst.msk [vmem:[#allocation2 + $0x14] sm:$0xf] %vm836, %v799
        %843 = vst.msk [vmem:[#allocation2 + $0x18] sm:$0xf] %vm836, %v801
        %844 = vst.msk [vmem:[#allocation2 + $0x1c] sm:$0xf] %vm836, %v803
        %845 = vst.msk [vmem:[#allocation2 + $0x20] sm:$0xf] %vm836, %v805
        %846 = vst.msk [vmem:[#allocation2 + $0x24] sm:$0xf] %vm836, %v807
        %847 = vst.msk [vmem:[#allocation2 + $0x28] sm:$0xf] %vm836, %v809
        %848 = vst.msk [vmem:[#allocation2 + $0x2c] sm:$0xf] %vm836, %v811
        %849 = vst.msk [vmem:[#allocation2 + $0x30] sm:$0xf] %vm836, %v813
        %850 = vst.msk [vmem:[#allocation2 + $0x34] sm:$0xf] %vm836, %v815
        %851 = vst.msk [vmem:[#allocation2 + $0x38] sm:$0xf] %vm836, %v817
        %852 = vst.msk [vmem:[#allocation2 + $0x3c] sm:$0xf] %vm836, %v819
        %v854 = vrot.slane %v266, 5
        %v855 = vrot.slane %v854, 4
        %v856 = vrot.slane %v267, 5
        %v857 = vsel %vm575, %v855, %v856
        %v858 = vrot.slane %v856, 4
        %v859 = vrot.slane %v268, 5
        %v860 = vsel %vm575, %v858, %v859
        %861 = vrot.lane.b32.xlu0 %v586, 20
        %v862 = vpop.permute.xlu0 %861
        %863 = vrot.lane.b32.xlu0 %v589, 20
        %v864 = vpop.permute.xlu0 %863
        %865 = vrot.lane.b32.xlu0 %v593, 20
        %v866 = vpop.permute.xlu0 %865
        %867 = vrot.lane.b32.xlu0 %v596, 20
        %v868 = vpop.permute.xlu0 %867
        %869 = vrot.lane.b32.xlu0 %v600, 20
        %v870 = vpop.permute.xlu0 %869
        %871 = vrot.lane.b32.xlu0 %v603, 20
        %v872 = vpop.permute.xlu0 %871
        %873 = vrot.lane.b32.xlu0 %v607, 20
        %v874 = vpop.permute.xlu0 %873
        %875 = vrot.lane.b32.xlu0 %v610, 20
        %v876 = vpop.permute.xlu0 %875
        %877 = vrot.lane.b32.xlu0 %v614, 20
        %v878 = vpop.permute.xlu0 %877
        %879 = vrot.lane.b32.xlu0 %v617, 20
        %v880 = vpop.permute.xlu0 %879
        %881 = vrot.lane.b32.xlu0 %v621, 20
        %v882 = vpop.permute.xlu0 %881
        %883 = vrot.lane.b32.xlu0 %v624, 20
        %v884 = vpop.permute.xlu0 %883
        %885 = vrot.lane.b32.xlu0 %v628, 20
        %v886 = vpop.permute.xlu0 %885
        %887 = vrot.lane.b32.xlu0 %v631, 20
        %v888 = vpop.permute.xlu0 %887
        %889 = vrot.lane.b32.xlu0 %v857, 20
        %v890 = vpop.permute.xlu0 %889
        %891 = vrot.lane.b32.xlu0 %v860, 20
        %v892 = vpop.permute.xlu0 %891
        %vm909 = vcmask 191648
        %910 = vst.msk [vmem:[#allocation2] sm:$0xf] %vm909, %v862
        %911 = vst.msk [vmem:[#allocation2 + $0x4] sm:$0xf] %vm909, %v864
        %912 = vst.msk [vmem:[#allocation2 + $0x8] sm:$0xf] %vm909, %v866
        %913 = vst.msk [vmem:[#allocation2 + $0xc] sm:$0xf] %vm909, %v868
        %914 = vst.msk [vmem:[#allocation2 + $0x10] sm:$0xf] %vm909, %v870
        %915 = vst.msk [vmem:[#allocation2 + $0x14] sm:$0xf] %vm909, %v872
        %916 = vst.msk [vmem:[#allocation2 + $0x18] sm:$0xf] %vm909, %v874
        %917 = vst.msk [vmem:[#allocation2 + $0x1c] sm:$0xf] %vm909, %v876
        %918 = vst.msk [vmem:[#allocation2 + $0x20] sm:$0xf] %vm909, %v878
        %919 = vst.msk [vmem:[#allocation2 + $0x24] sm:$0xf] %vm909, %v880
        %920 = vst.msk [vmem:[#allocation2 + $0x28] sm:$0xf] %vm909, %v882
        %921 = vst.msk [vmem:[#allocation2 + $0x2c] sm:$0xf] %vm909, %v884
        %922 = vst.msk [vmem:[#allocation2 + $0x30] sm:$0xf] %vm909, %v886
        %923 = vst.msk [vmem:[#allocation2 + $0x34] sm:$0xf] %vm909, %v888
        %924 = vst.msk [vmem:[#allocation2 + $0x38] sm:$0xf] %vm909, %v890
        %925 = vst.msk [vmem:[#allocation2 + $0x3c] sm:$0xf] %vm909, %v892
        %928 = vrot.lane.b32.xlu0 %v248, 24
        %v929 = vpop.permute.xlu0 %928
        %930 = vrot.lane.b32.xlu0 %v249, 24
        %v931 = vpop.permute.xlu0 %930
        %932 = vrot.lane.b32.xlu0 %v251, 24
        %v933 = vpop.permute.xlu0 %932
        %934 = vrot.lane.b32.xlu0 %v252, 24
        %v935 = vpop.permute.xlu0 %934
        %936 = vrot.lane.b32.xlu0 %v254, 24
        %v937 = vpop.permute.xlu0 %936
        %938 = vrot.lane.b32.xlu0 %v255, 24
        %v939 = vpop.permute.xlu0 %938
        %940 = vrot.lane.b32.xlu0 %v257, 24
        %v941 = vpop.permute.xlu0 %940
        %942 = vrot.lane.b32.xlu0 %v258, 24
        %v943 = vpop.permute.xlu0 %942
        %944 = vrot.lane.b32.xlu0 %v260, 24
        %v945 = vpop.permute.xlu0 %944
        %946 = vrot.lane.b32.xlu0 %v261, 24
        %v947 = vpop.permute.xlu0 %946
        %948 = vrot.lane.b32.xlu0 %v263, 24
        %v949 = vpop.permute.xlu0 %948
        %950 = vrot.lane.b32.xlu0 %v264, 24
        %v951 = vpop.permute.xlu0 %950
        %952 = vrot.lane.b32.xlu0 %v266, 24
        %v953 = vpop.permute.xlu0 %952
        %954 = vrot.lane.b32.xlu0 %v267, 24
        %v955 = vpop.permute.xlu0 %954
        %956 = vrot.lane.b32.xlu0 %v269, 24
        %v957 = vpop.permute.xlu0 %956
        %958 = vrot.lane.b32.xlu0 %v270, 24
        %v959 = vpop.permute.xlu0 %958
        %vm976 = vcmask 224448
        %977 = vst.msk [vmem:[#allocation2] sm:$0xf] %vm976, %v929
        %978 = vst.msk [vmem:[#allocation2 + $0x4] sm:$0xf] %vm976, %v931
        %979 = vst.msk [vmem:[#allocation2 + $0x8] sm:$0xf] %vm976, %v933
        %980 = vst.msk [vmem:[#allocation2 + $0xc] sm:$0xf] %vm976, %v935
        %981 = vst.msk [vmem:[#allocation2 + $0x10] sm:$0xf] %vm976, %v937
        %982 = vst.msk [vmem:[#allocation2 + $0x14] sm:$0xf] %vm976, %v939
        %983 = vst.msk [vmem:[#allocation2 + $0x18] sm:$0xf] %vm976, %v941
        %984 = vst.msk [vmem:[#allocation2 + $0x1c] sm:$0xf] %vm976, %v943
        %985 = vst.msk [vmem:[#allocation2 + $0x20] sm:$0xf] %vm976, %v945
        %986 = vst.msk [vmem:[#allocation2 + $0x24] sm:$0xf] %vm976, %v947
        %987 = vst.msk [vmem:[#allocation2 + $0x28] sm:$0xf] %vm976, %v949
        %988 = vst.msk [vmem:[#allocation2 + $0x2c] sm:$0xf] %vm976, %v951
        %989 = vst.msk [vmem:[#allocation2 + $0x30] sm:$0xf] %vm976, %v953
        %990 = vst.msk [vmem:[#allocation2 + $0x34] sm:$0xf] %vm976, %v955
        %991 = vst.msk [vmem:[#allocation2 + $0x38] sm:$0xf] %vm976, %v957
        %992 = vst.msk [vmem:[#allocation2 + $0x3c] sm:$0xf] %vm976, %v959
        %v994 = vshrl.u32 %v269, 16
        %v996 = vrot.slane %v994, 4
        %v997 = vshll.u32 %v269, 16
        %v999 = vrot.slane %v997, 5
        %v1000 = vor.u32 %v996, %v999
        %v1001 = vrot.slane %v1000, 4
        %v1003 = vshll.u32 %v270, 16
        %v1005 = vrot.slane %v1003, 5
        %v1006 = vsel %vm291, %v1001, %v1005
        %v1007 = vshrl.u32 %v270, 16
        %v1009 = vrot.slane %v1007, 4
        %v1010 = vor.u32 %v1009, %v1005
        %v1011 = vrot.slane %v1010, 4
        %v1013 = vshll.u32 %v271, 16
        %v1015 = vrot.slane %v1013, 5
        %v1016 = vsel %vm291, %v1011, %v1015
        %1017 = vrot.lane.b32.xlu0 %v353, 28
        %v1018 = vpop.permute.xlu0 %1017
        %1019 = vrot.lane.b32.xlu0 %v363, 28
        %v1020 = vpop.permute.xlu0 %1019
        %1021 = vrot.lane.b32.xlu0 %v377, 28
        %v1022 = vpop.permute.xlu0 %1021
        %1023 = vrot.lane.b32.xlu0 %v387, 28
        %v1024 = vpop.permute.xlu0 %1023
        %1025 = vrot.lane.b32.xlu0 %v401, 28
        %v1026 = vpop.permute.xlu0 %1025
        %1027 = vrot.lane.b32.xlu0 %v411, 28
        %v1028 = vpop.permute.xlu0 %1027
        %1029 = vrot.lane.b32.xlu0 %v425, 28
        %v1030 = vpop.permute.xlu0 %1029
        %1031 = vrot.lane.b32.xlu0 %v435, 28
        %v1032 = vpop.permute.xlu0 %1031
        %1033 = vrot.lane.b32.xlu0 %v449, 28
        %v1034 = vpop.permute.xlu0 %1033
        %1035 = vrot.lane.b32.xlu0 %v459, 28
        %v1036 = vpop.permute.xlu0 %1035
        %1037 = vrot.lane.b32.xlu0 %v473, 28
        %v1038 = vpop.permute.xlu0 %1037
        %1039 = vrot.lane.b32.xlu0 %v483, 28
        %v1040 = vpop.permute.xlu0 %1039
        %1041 = vrot.lane.b32.xlu0 %v777, 28
        %v1042 = vpop.permute.xlu0 %1041
        %1043 = vrot.lane.b32.xlu0 %v787, 28
        %v1044 = vpop.permute.xlu0 %1043
        %1045 = vrot.lane.b32.xlu0 %v1006, 28
        %v1046 = vpop.permute.xlu0 %1045
        %1047 = vrot.lane.b32.xlu0 %v1016, 28
        %v1048 = vpop.permute.xlu0 %1047
        %vm1065 = vcmask 257248
        %1066 = vst.msk [vmem:[#allocation2] sm:$0xf] %vm1065, %v1018
        %1067 = vst.msk [vmem:[#allocation2 + $0x4] sm:$0xf] %vm1065, %v1020
        %1068 = vst.msk [vmem:[#allocation2 + $0x8] sm:$0xf] %vm1065, %v1022
        %1069 = vst.msk [vmem:[#allocation2 + $0xc] sm:$0xf] %vm1065, %v1024
        %1070 = vst.msk [vmem:[#allocation2 + $0x10] sm:$0xf] %vm1065, %v1026
        %1071 = vst.msk [vmem:[#allocation2 + $0x14] sm:$0xf] %vm1065, %v1028
        %1072 = vst.msk [vmem:[#allocation2 + $0x18] sm:$0xf] %vm1065, %v1030
        %1073 = vst.msk [vmem:[#allocation2 + $0x1c] sm:$0xf] %vm1065, %v1032
        %1074 = vst.msk [vmem:[#allocation2 + $0x20] sm:$0xf] %vm1065, %v1034
        %1075 = vst.msk [vmem:[#allocation2 + $0x24] sm:$0xf] %vm1065, %v1036
        %1076 = vst.msk [vmem:[#allocation2 + $0x28] sm:$0xf] %vm1065, %v1038
        %1077 = vst.msk [vmem:[#allocation2 + $0x2c] sm:$0xf] %vm1065, %v1040
        %1078 = vst.msk [vmem:[#allocation2 + $0x30] sm:$0xf] %vm1065, %v1042
        %1079 = vst.msk [vmem:[#allocation2 + $0x34] sm:$0xf] %vm1065, %v1044
        %1080 = vst.msk [vmem:[#allocation2 + $0x38] sm:$0xf] %vm1065, %v1046
        %1081 = vst.msk [vmem:[#allocation2 + $0x3c] sm:$0xf] %vm1065, %v1048
        %v1083 = vrot.slane %v269, 5
        %v1084 = vrot.slane %v1083, 4
        %v1085 = vrot.slane %v270, 5
        %v1086 = vsel %vm575, %v1084, %v1085
        %v1087 = vrot.slane %v1085, 4
        %v1088 = vrot.slane %v271, 5
        %v1089 = vsel %vm575, %v1087, %v1088
        %1090 = vrot.lane.b32.xlu0 %v593, 32
        %v1091 = vpop.permute.xlu0 %1090
        %1092 = vrot.lane.b32.xlu0 %v596, 32
        %v1093 = vpop.permute.xlu0 %1092
        %1094 = vrot.lane.b32.xlu0 %v600, 32
        %v1095 = vpop.permute.xlu0 %1094
        %1096 = vrot.lane.b32.xlu0 %v603, 32
        %v1097 = vpop.permute.xlu0 %1096
        %1098 = vrot.lane.b32.xlu0 %v607, 32
        %v1099 = vpop.permute.xlu0 %1098
        %1100 = vrot.lane.b32.xlu0 %v610, 32
        %v1101 = vpop.permute.xlu0 %1100
        %1102 = vrot.lane.b32.xlu0 %v614, 32
        %v1103 = vpop.permute.xlu0 %1102
        %1104 = vrot.lane.b32.xlu0 %v617, 32
        %v1105 = vpop.permute.xlu0 %1104
        %1106 = vrot.lane.b32.xlu0 %v621, 32
        %v1107 = vpop.permute.xlu0 %1106
        %1108 = vrot.lane.b32.xlu0 %v624, 32
        %v1109 = vpop.permute.xlu0 %1108
        %1110 = vrot.lane.b32.xlu0 %v628, 32
        %v1111 = vpop.permute.xlu0 %1110
        %1112 = vrot.lane.b32.xlu0 %v631, 32
        %v1113 = vpop.permute.xlu0 %1112
        %1114 = vrot.lane.b32.xlu0 %v857, 32
        %v1115 = vpop.permute.xlu0 %1114
        %1116 = vrot.lane.b32.xlu0 %v860, 32
        %v1117 = vpop.permute.xlu0 %1116
        %1118 = vrot.lane.b32.xlu0 %v1086, 32
        %v1119 = vpop.permute.xlu0 %1118
        %1120 = vrot.lane.b32.xlu0 %v1089, 32
        %v1121 = vpop.permute.xlu0 %1120
        %vm1138 = vcmask 290048
        %1139 = vst.msk [vmem:[#allocation2] sm:$0xf] %vm1138, %v1091
        %1140 = vst.msk [vmem:[#allocation2 + $0x4] sm:$0xf] %vm1138, %v1093
        %1141 = vst.msk [vmem:[#allocation2 + $0x8] sm:$0xf] %vm1138, %v1095
        %1142 = vst.msk [vmem:[#allocation2 + $0xc] sm:$0xf] %vm1138, %v1097
        %1143 = vst.msk [vmem:[#allocation2 + $0x10] sm:$0xf] %vm1138, %v1099
        %1144 = vst.msk [vmem:[#allocation2 + $0x14] sm:$0xf] %vm1138, %v1101
        %1145 = vst.msk [vmem:[#allocation2 + $0x18] sm:$0xf] %vm1138, %v1103
        %1146 = vst.msk [vmem:[#allocation2 + $0x1c] sm:$0xf] %vm1138, %v1105
        %1147 = vst.msk [vmem:[#allocation2 + $0x20] sm:$0xf] %vm1138, %v1107
        %1148 = vst.msk [vmem:[#allocation2 + $0x24] sm:$0xf] %vm1138, %v1109
        %1149 = vst.msk [vmem:[#allocation2 + $0x28] sm:$0xf] %vm1138, %v1111
        %1150 = vst.msk [vmem:[#allocation2 + $0x2c] sm:$0xf] %vm1138, %v1113
        %1151 = vst.msk [vmem:[#allocation2 + $0x30] sm:$0xf] %vm1138, %v1115
        %1152 = vst.msk [vmem:[#allocation2 + $0x34] sm:$0xf] %vm1138, %v1117
        %1153 = vst.msk [vmem:[#allocation2 + $0x38] sm:$0xf] %vm1138, %v1119
        %1154 = vst.msk [vmem:[#allocation2 + $0x3c] sm:$0xf] %vm1138, %v1121
        %v1155 = vld [vmem:[#allocation2] sm:$0xf]
        %v1156 = vld [vmem:[#allocation2 + $0x4] sm:$0xf]
        %v1157 = vld [vmem:[#allocation2 + $0x8] sm:$0xf]
        %v1158 = vld [vmem:[#allocation2 + $0xc] sm:$0xf]
        %v1159 = vld [vmem:[#allocation2 + $0x10] sm:$0xf]
        %v1160 = vld [vmem:[#allocation2 + $0x14] sm:$0xf]
        %v1161 = vld [vmem:[#allocation2 + $0x18] sm:$0xf]
        %v1162 = vld [vmem:[#allocation2 + $0x1c] sm:$0xf]
        %v1163 = vld [vmem:[#allocation2 + $0x20] sm:$0xf]
        %v1164 = vld [vmem:[#allocation2 + $0x24] sm:$0xf]
        %v1165 = vld [vmem:[#allocation2 + $0x28] sm:$0xf]
        %v1166 = vld [vmem:[#allocation2 + $0x2c] sm:$0xf]
        %v1167 = vld [vmem:[#allocation2 + $0x30] sm:$0xf]
        %v1168 = vld [vmem:[#allocation2 + $0x34] sm:$0xf]
        %v1169 = vld [vmem:[#allocation2 + $0x38] sm:$0xf]
        %v1170 = vld [vmem:[#allocation2 + $0x3c] sm:$0xf]
        %v1171 = vld [vmem:[%s1] sm:$0xf]
        %v1172 = vld [vmem:[%s1 + $0x4] sm:$0xf]
        %v1173 = vld [vmem:[%s1 + $0x8] sm:$0xf]
        %v1174 = vld [vmem:[%s1 + $0xc] sm:$0xf]
        %v1175 = vld [vmem:[%s1 + $0x10] sm:$0x3]
        %v1176 = vld [vmem:[%s2] sm:$0x1]
        %v1178 = vlaneseq
        %v1179 = vshrl.u32 %v1178, 7
        %v1180 = vsub.s32 0, %v1179
        %v1181 = vrot.slane %v1176, %v1180
        %v1199 = vunpack.c.l.b16 %v1155
        %v1200 = vunpack.c.l.b16 %v1156
        %v1201 = vunpack.c.l.b16 %v1157
        %v1202 = vunpack.c.l.b16 %v1158
        %v1203 = vunpack.c.l.b16 %v1159
        %v1204 = vunpack.c.l.b16 %v1160
        %v1205 = vunpack.c.l.b16 %v1161
        %v1206 = vunpack.c.l.b16 %v1162
        %v1207 = vunpack.c.l.b16 %v1163
        %v1208 = vunpack.c.l.b16 %v1164
        %v1209 = vunpack.c.l.b16 %v1165
        %v1210 = vunpack.c.l.b16 %v1166
        %v1211 = vunpack.c.l.b16 %v1167
        %v1212 = vunpack.c.l.b16 %v1168
        %v1213 = vunpack.c.l.b16 %v1169
        %v1214 = vunpack.c.l.b16 %v1170
        %v1215 = vpack.c.b16 %v1200, %v1199
        %v1216 = vpack.c.b16 %v1202, %v1201
        %v1217 = vpack.c.b16 %v1204, %v1203
        %v1218 = vpack.c.b16 %v1206, %v1205
        %v1219 = vpack.c.b16 %v1208, %v1207
        %v1220 = vpack.c.b16 %v1210, %v1209
        %v1221 = vpack.c.b16 %v1212, %v1211
        %v1222 = vpack.c.b16 %v1214, %v1213
        %v1228 = vunpack.c.l.b16 %v1171
        %v1229 = vunpack.c.l.b16 %v1172
        %v1230 = vunpack.c.l.b16 %v1173
        %v1231 = vunpack.c.l.b16 %v1174
        %v1232 = vunpack.c.l.b16 %v1175
        %v1233 = vpack.c.b16 %v1229, %v1228
        %v1234 = vpack.c.b16 %v1231, %v1230
        %v1235 = vpack.c.b16 %v1232, %v1232
        %vm1238 = vcmask 293888
        %v1240 = vsel %vm1238, %v1215, 0
        %v1243 = vsel %vm1238, %v1216, 0
        %v1246 = vsel %vm1238, %v1217, 0
        %v1249 = vsel %vm1238, %v1218, 0
        %v1252 = vsel %vm1238, %v1219, 0
        %v1255 = vsel %vm1238, %v1220, 0
        %v1258 = vsel %vm1238, %v1221, 0
        %v1261 = vsel %vm1238, %v1222, 0
        %vm1263 = vcmask 1041408
        %v1265 = vsel %vm1263, %v1235, 0
        %1267 = vmatprep.subr.bf16.mxu0 0
        %1268 = vmatpush1.bf16.msra.mxu0 0
        %1269 = vmatprep.subr.bf16.mxu0 0
        %1270 = vmatpush1.bf16.msra.mxu0 0
        %1271 = vmatprep.subr.bf16.mxu0 0
        %1272 = vmatpush1.bf16.msra.mxu0 0
        %1273 = vmatprep.subr.bf16.mxu0 0
        %1274 = vmatpush1.bf16.msra.mxu0 0
        %1275 = vmatprep.subr.bf16.mxu0 0
        %1276 = vmatpush1.bf16.msra.mxu0 0
        %1277 = vmatprep.subr.bf16.mxu0 0
        %1278 = vmatpush1.bf16.msra.mxu0 %v1265
        %1279 = vmatprep.subr.bf16.mxu0 0
        %1280 = vmatpush1.bf16.msra.mxu0 %v1234
        %1281 = vmatprep.subr.bf16.mxu0 0
        %1282 = vmatpush1.bf16.msra.mxu0 %v1233
        %1283 = vmatprep.subr.bf16.mxu0 0
        %1284 = vmatpush2.bf16.msra.mxu0 0
        %1285 = vmatprep.subr.bf16.mxu0 0
        %1286 = vmatpush2.bf16.msra.mxu0 0
        %1287 = vmatprep.subr.bf16.mxu0 0
        %1288 = vmatpush2.bf16.msra.mxu0 0
        %1289 = vmatprep.subr.bf16.mxu0 0
        %1290 = vmatpush2.bf16.msra.mxu0 0
        %1291 = vmatprep.subr.bf16.mxu0 0
        %1292 = vmatpush2.bf16.msra.mxu0 0
        %1293 = vmatprep.subr.bf16.mxu0 0
        %1294 = vmatpush2.bf16.msra.mxu0 0
        %1295 = vmatprep.subr.bf16.mxu0 0
        %1296 = vmatpush2.bf16.msra.mxu0 0
        %1297 = vmatprep.subr.bf16.mxu0 0
        %1298 = vmatpush2.bf16.msra.mxu0 0
        %1299 = vmatprep.mubr.bf16.mxu0 0
        %1300 = vmatmul.mubr.bf16.gmra.mxu0 %v1240
        %v1301 = vpop.f32.mrf.mxu0
        %v1302 = vadd.f32 %v1181, %v1301
        %v1303 = vpop.f32.mrf.mxu0
        %v1304 = vpop.f32.mrf.mxu0
        %v1305 = vadd.f32 %v1181, %v1304
        %v1306 = vpop.f32.mrf.mxu0
        %1307 = vmatprep.mubr.bf16.mxu0 0
        %1308 = vmatmul.mubr.bf16.gmra.mxu0 %v1243
        %v1309 = vpop.f32.mrf.mxu0
        %v1310 = vadd.f32 %v1181, %v1309
        %v1311 = vpop.f32.mrf.mxu0
        %v1312 = vpop.f32.mrf.mxu0
        %v1313 = vadd.f32 %v1181, %v1312
        %v1314 = vpop.f32.mrf.mxu0
        %1315 = vmatprep.mubr.bf16.mxu0 0
        %1316 = vmatmul.mubr.bf16.gmra.mxu0 %v1246
        %v1317 = vpop.f32.mrf.mxu0
        %v1318 = vadd.f32 %v1181, %v1317
        %v1319 = vpop.f32.mrf.mxu0
        %v1320 = vpop.f32.mrf.mxu0
        %v1321 = vadd.f32 %v1181, %v1320
        %v1322 = vpop.f32.mrf.mxu0
        %1323 = vmatprep.mubr.bf16.mxu0 0
        %1324 = vmatmul.mubr.bf16.gmra.mxu0 %v1249
        %v1325 = vpop.f32.mrf.mxu0
        %v1326 = vadd.f32 %v1181, %v1325
        %v1327 = vpop.f32.mrf.mxu0
        %v1328 = vpop.f32.mrf.mxu0
        %v1329 = vadd.f32 %v1181, %v1328
        %v1330 = vpop.f32.mrf.mxu0
        %1331 = vmatprep.mubr.bf16.mxu0 0
        %1332 = vmatmul.mubr.bf16.gmra.mxu0 %v1252
        %v1333 = vpop.f32.mrf.mxu0
        %v1334 = vadd.f32 %v1181, %v1333
        %v1335 = vpop.f32.mrf.mxu0
        %v1336 = vpop.f32.mrf.mxu0
        %v1337 = vadd.f32 %v1181, %v1336
        %v1338 = vpop.f32.mrf.mxu0
        %1339 = vmatprep.mubr.bf16.mxu0 0
        %1340 = vmatmul.mubr.bf16.gmra.mxu0 %v1255
        %v1341 = vpop.f32.mrf.mxu0
        %v1342 = vadd.f32 %v1181, %v1341
        %v1343 = vpop.f32.mrf.mxu0
        %v1344 = vpop.f32.mrf.mxu0
        %v1345 = vadd.f32 %v1181, %v1344
        %v1346 = vpop.f32.mrf.mxu0
        %1347 = vmatprep.mubr.bf16.mxu0 0
        %1348 = vmatmul.mubr.bf16.gmra.mxu0 %v1258
        %v1349 = vpop.f32.mrf.mxu0
        %v1350 = vadd.f32 %v1181, %v1349
        %v1351 = vpop.f32.mrf.mxu0
        %v1352 = vpop.f32.mrf.mxu0
        %v1353 = vadd.f32 %v1181, %v1352
        %v1354 = vpop.f32.mrf.mxu0
        %1355 = vmatprep.mubr.bf16.mxu0 0
        %1356 = vmatmul.mubr.bf16.gmra.mxu0 %v1261
        %v1357 = vpop.f32.mrf.mxu0
        %v1358 = vadd.f32 %v1181, %v1357
        %v1359 = vpop.f32.mrf.mxu0
        %v1360 = vpop.f32.mrf.mxu0
        %v1361 = vadd.f32 %v1181, %v1360
        %v1362 = vpop.f32.mrf.mxu0
        %1363 = vdwg.mxu0
        %v1364 = vmax.f32 %v1302, 0.0
        %v1365 = vmax.f32 %v1305, 0.0
        %v1366 = vmax.f32 %v1310, 0.0
        %v1367 = vmax.f32 %v1313, 0.0
        %v1368 = vmax.f32 %v1318, 0.0
        %v1369 = vmax.f32 %v1321, 0.0
        %v1370 = vmax.f32 %v1326, 0.0
        %v1371 = vmax.f32 %v1329, 0.0
        %v1372 = vmax.f32 %v1334, 0.0
        %v1373 = vmax.f32 %v1337, 0.0
        %v1374 = vmax.f32 %v1342, 0.0
        %v1375 = vmax.f32 %v1345, 0.0
        %v1376 = vmax.f32 %v1350, 0.0
        %v1377 = vmax.f32 %v1353, 0.0
        %v1378 = vmax.f32 %v1358, 0.0
        %v1379 = vmax.f32 %v1361, 0.0
        %v1380 = vpack.c.bf16 %v1365, %v1364
        %v1381 = vpack.c.bf16 %v1367, %v1366
        %v1382 = vpack.c.bf16 %v1369, %v1368
        %v1383 = vpack.c.bf16 %v1371, %v1370
        %v1384 = vpack.c.bf16 %v1373, %v1372
        %v1385 = vpack.c.bf16 %v1375, %v1374
        %v1386 = vpack.c.bf16 %v1377, %v1376
        %v1387 = vpack.c.bf16 %v1379, %v1378
        %v1388 = vld [vmem:[%s3] sm:$0x3]
        %vm1389 = vcmask 64512
        %v1391 = vsel %vm1389, %v1388, 0
        %v1394 = vsel %vm1389, %v1380, 0
        %v1397 = vsel %vm1389, %v1381, 0
        %v1400 = vsel %vm1389, %v1382, 0
        %v1403 = vsel %vm1389, %v1383, 0
        %v1406 = vsel %vm1389, %v1384, 0
        %v1409 = vsel %vm1389, %v1385, 0
        %v1412 = vsel %vm1389, %v1386, 0
        %v1415 = vsel %vm1389, %v1387, 0
        %1417 = vmatprep.subr.bf16.mxu0 0
        %1418 = vmatpush1.bf16.xpose.msra.mxu0 %v1415
        %1419 = vmatprep.subr.bf16.mxu0 0
        %1420 = vmatpush1.bf16.xpose.msra.mxu0 %v1412
        %1421 = vmatprep.subr.bf16.mxu0 0
        %1422 = vmatpush1.bf16.xpose.msra.mxu0 %v1409
        %1423 = vmatprep.subr.bf16.mxu0 0
        %1424 = vmatpush1.bf16.xpose.msra.mxu0 %v1406
        %1425 = vmatprep.subr.bf16.mxu0 0
        %1426 = vmatpush1.bf16.xpose.msra.mxu0 %v1403
        %1427 = vmatprep.subr.bf16.mxu0 0
        %1428 = vmatpush1.bf16.xpose.msra.mxu0 %v1400
        %1429 = vmatprep.subr.bf16.mxu0 0
        %1430 = vmatpush1.bf16.xpose.msra.mxu0 %v1397
        %1431 = vmatprep.subr.bf16.mxu0 0
        %1432 = vmatpush1.bf16.xpose.msra.mxu0 %v1394
        %1433 = vmatprep.subr.bf16.mxu0 0
        %1434 = vmatpush2.bf16.xpose.msra.mxu0 0
        %1435 = vmatprep.subr.bf16.mxu0 0
        %1436 = vmatpush2.bf16.xpose.msra.mxu0 0
        %1437 = vmatprep.subr.bf16.mxu0 0
        %1438 = vmatpush2.bf16.xpose.msra.mxu0 0
        %1439 = vmatprep.subr.bf16.mxu0 0
        %1440 = vmatpush2.bf16.xpose.msra.mxu0 0
        %1441 = vmatprep.subr.bf16.mxu0 0
        %1442 = vmatpush2.bf16.xpose.msra.mxu0 0
        %1443 = vmatprep.subr.bf16.mxu0 0
        %1444 = vmatpush2.bf16.xpose.msra.mxu0 0
        %1445 = vmatprep.subr.bf16.mxu0 0
        %1446 = vmatpush2.bf16.xpose.msra.mxu0 0
        %1447 = vmatprep.subr.bf16.mxu0 0
        %1448 = vmatpush2.bf16.xpose.msra.mxu0 0
        %1449 = vmatprep.mubr.bf16.mxu0 0
        %1450 = vmatmul.mubr.bf16.gmra.mxu0 %v1391
        %v1451 = vpop.f32.mrf.mxu0
        %v1452 = vadd.f32 0.0, %v1451
        %v1453 = vpop.f32.mrf.mxu0
        %v1454 = vpop.f32.mrf.mxu0
        %v1455 = vpop.f32.mrf.mxu0
        %1456 = vdwg.mxu0
        %v1457 = vpack.c.bf16 %v1452, %v1452
        %v1458 = vld [vmem:[%s4] sm:$0xf]
        %v1459 = vld [vmem:[%s4 + $0x4] sm:$0xf]
        %v1462 = vunpack.c.l.b16 %v1458
        %v1463 = vunpack.c.l.b16 %v1459
        %v1464 = vpack.c.b16 %v1463, %v1462
        %vm1466 = vcmask 130048
        %v1468 = vsel %vm1466, %v1457, 0
        %1470 = vmatprep.subr.bf16.mxu0 0
        %1471 = vmatpush1.bf16.msra.mxu0 0
        %1472 = vmatprep.subr.bf16.mxu0 0
        %1473 = vmatpush1.bf16.msra.mxu0 0
        %1474 = vmatprep.subr.bf16.mxu0 0
        %1475 = vmatpush1.bf16.msra.mxu0 0
        %1476 = vmatprep.subr.bf16.mxu0 0
        %1477 = vmatpush1.bf16.msra.mxu0 0
        %1478 = vmatprep.subr.bf16.mxu0 0
        %1479 = vmatpush1.bf16.msra.mxu0 0
        %1480 = vmatprep.subr.bf16.mxu0 0
        %1481 = vmatpush1.bf16.msra.mxu0 0
        %1482 = vmatprep.subr.bf16.mxu0 0
        %1483 = vmatpush1.bf16.msra.mxu0 0
        %1484 = vmatprep.subr.bf16.mxu0 0
        %1485 = vmatpush1.bf16.msra.mxu0 %v1464
        %1486 = vmatprep.subr.bf16.mxu0 0
        %1487 = vmatpush2.bf16.msra.mxu0 0
        %1488 = vmatprep.subr.bf16.mxu0 0
        %1489 = vmatpush2.bf16.msra.mxu0 0
        %1490 = vmatprep.subr.bf16.mxu0 0
        %1491 = vmatpush2.bf16.msra.mxu0 0
        %1492 = vmatprep.subr.bf16.mxu0 0
        %1493 = vmatpush2.bf16.msra.mxu0 0
        %1494 = vmatprep.subr.bf16.mxu0 0
        %1495 = vmatpush2.bf16.msra.mxu0 0
        %1496 = vmatprep.subr.bf16.mxu0 0
        %1497 = vmatpush2.bf16.msra.mxu0 0
        %1498 = vmatprep.subr.bf16.mxu0 0
        %1499 = vmatpush2.bf16.msra.mxu0 0
        %1500 = vmatprep.subr.bf16.mxu0 0
        %1501 = vmatpush2.bf16.msra.mxu0 0
        %1502 = vmatprep.mubr.bf16.mxu0 0
        %1503 = vmatmul.mubr.bf16.gmra.mxu0 %v1468
        %v1504 = vpop.f32.mrf.mxu0
        %v1505 = vadd.f32 0.0, %v1504
        %v1506 = vpop.f32.mrf.mxu0
        %v1507 = vpop.f32.mrf.mxu0
        %v1508 = vpop.f32.mrf.mxu0
        %1509 = vdwg.mxu0
        %v1510 = vpack.c.bf16 %v1505, %v1505
        %v1513 = vunpack.c.l.s4 1966171168
        %v1514 = vunpack.c.0.s8 %v1513
        %v1515 = vlaneseq
        %v1516 = vshrl.u32 %v1515, 7
        %v1517 = vsub.s32 %v1514, %v1516
        %v1518 = vrot.slane %v1510, %v1517
        %v1519 = vcombine.high %v1518, %v1518
        %v1521 = vunpack.c.l.s4 1966171168
        %v1522 = vunpack.c.0.s8 %v1521
        %v1523 = vlaneseq
        %v1524 = vshrl.u32 %v1523, 7
        %v1525 = vsub.s32 %v1522, %v1524
        %v1526 = vrot.slane %v1518, %v1525
        %v1528 = vunpack.c.l.s4 1966171168
        %v1529 = vunpack.c.0.s8 %v1528
        %v1530 = vlaneseq
        %v1531 = vshrl.u32 %v1530, 7
        %v1532 = vsub.s32 %v1529, %v1531
        %v1533 = vrot.slane %v1519, %v1532
        %v1534 = vunpack.i.l.s16 %v1526
        %v1535 = vunpack.i.h.s16 %v1526
        %v1536 = vunpack.i.l.s16 %v1533
        %v1537 = vpack.i.b16 %v1534, %v1534
        %v1538 = vpack.i.b16 %v1535, %v1535
        %v1539 = vpack.i.b16 %v1536, %v1536
        %v1541 = vunpack.c.l.s4 286326784
        %v1542 = vunpack.c.0.s8 %v1541
        %v1543 = vlaneseq
        %v1544 = vshrl.u32 %v1543, 7
        %v1545 = vsub.s32 %v1542, %v1544
        %v1546 = vrot.slane %v1537, %v1545
        %v1548 = vunpack.c.l.s4 286326784
        %v1549 = vunpack.c.0.s8 %v1548
        %v1550 = vlaneseq
        %v1551 = vshrl.u32 %v1550, 7
        %v1552 = vsub.s32 %v1549, %v1551
        %v1553 = vrot.slane %v1538, %v1552
        %v1555 = vunpack.c.l.s4 286326784
        %v1556 = vunpack.c.0.s8 %v1555
        %v1557 = vlaneseq
        %v1558 = vshrl.u32 %v1557, 7
        %v1559 = vsub.s32 %v1556, %v1558
        %v1560 = vrot.slane %v1539, %v1559
        %vm1564 = vcmask 516096
        %vm1565 = vsmask.f32 256
        %vm1566 = vmand %vm1564, %vm1565
        %v1567 = vld [vmem:[%s231] sm:$0x1]
        %v1568 = vsel %vm1566, %v1546, %v1567
        %1569 = vst [vmem:[%s231] sm:$0x1] %v1568
        %v1570 = vld [vmem:[%s231 + $0x4] sm:$0x1]
        %v1571 = vsel %vm1566, %v1553, %v1570
        %1572 = vst [vmem:[%s231 + $0x4] sm:$0x1] %v1571
        %v1573 = vld [vmem:[%s231 + $0x8] sm:$0x1]
        %v1574 = vsel %vm1566, %v1560, %v1573
        %1575 = vst [vmem:[%s231 + $0x8] sm:$0x1] %v1574
        %1577 = vrot.lane.b32.xlu0 %v1457, 112
        %v1578 = vpop.permute.xlu0 %1577
        %v1580 = vsel %vm1466, %v1578, 0
        %1582 = vmatprep.subr.bf16.mxu0 0
        %1583 = vmatpush1.bf16.msra.mxu0 0
        %1584 = vmatprep.subr.bf16.mxu0 0
        %1585 = vmatpush1.bf16.msra.mxu0 0
        %1586 = vmatprep.subr.bf16.mxu0 0
        %1587 = vmatpush1.bf16.msra.mxu0 0
        %1588 = vmatprep.subr.bf16.mxu0 0
        %1589 = vmatpush1.bf16.msra.mxu0 0
        %1590 = vmatprep.subr.bf16.mxu0 0
        %1591 = vmatpush1.bf16.msra.mxu0 0
        %1592 = vmatprep.subr.bf16.mxu0 0
        %1593 = vmatpush1.bf16.msra.mxu0 0
        %1594 = vmatprep.subr.bf16.mxu0 0
        %1595 = vmatpush1.bf16.msra.mxu0 0
        %1596 = vmatprep.subr.bf16.mxu0 0
        %1597 = vmatpush1.bf16.msra.mxu0 %v1464
        %1598 = vmatprep.subr.bf16.mxu0 0
        %1599 = vmatpush2.bf16.msra.mxu0 0
        %1600 = vmatprep.subr.bf16.mxu0 0
        %1601 = vmatpush2.bf16.msra.mxu0 0
        %1602 = vmatprep.subr.bf16.mxu0 0
        %1603 = vmatpush2.bf16.msra.mxu0 0
        %1604 = vmatprep.subr.bf16.mxu0 0
        %1605 = vmatpush2.bf16.msra.mxu0 0
        %1606 = vmatprep.subr.bf16.mxu0 0
        %1607 = vmatpush2.bf16.msra.mxu0 0
        %1608 = vmatprep.subr.bf16.mxu0 0
        %1609 = vmatpush2.bf16.msra.mxu0 0
        %1610 = vmatprep.subr.bf16.mxu0 0
        %1611 = vmatpush2.bf16.msra.mxu0 0
        %1612 = vmatprep.subr.bf16.mxu0 0
        %1613 = vmatpush2.bf16.msra.mxu0 0
        %1614 = vmatprep.mubr.bf16.mxu0 0
        %1615 = vmatmul.mubr.bf16.gmra.mxu0 %v1580
        %v1616 = vpop.f32.mrf.mxu0
        %v1617 = vadd.f32 0.0, %v1616
        %v1618 = vpop.f32.mrf.mxu0
        %v1619 = vpop.f32.mrf.mxu0
        %v1620 = vpop.f32.mrf.mxu0
        %1621 = vdwg.mxu0
        %v1622 = vpack.c.bf16 %v1617, %v1617
        %v1625 = vunpack.c.l.s4 1966171168
        %v1626 = vunpack.c.0.s8 %v1625
        %v1627 = vlaneseq
        %v1628 = vshrl.u32 %v1627, 7
        %v1629 = vsub.s32 %v1626, %v1628
        %v1630 = vrot.slane %v1622, %v1629
        %v1631 = vcombine.high %v1630, %v1630
        %v1633 = vunpack.c.l.s4 1966171168
        %v1634 = vunpack.c.0.s8 %v1633
        %v1635 = vlaneseq
        %v1636 = vshrl.u32 %v1635, 7
        %v1637 = vsub.s32 %v1634, %v1636
        %v1638 = vrot.slane %v1630, %v1637
        %v1640 = vunpack.c.l.s4 1966171168
        %v1641 = vunpack.c.0.s8 %v1640
        %v1642 = vlaneseq
        %v1643 = vshrl.u32 %v1642, 7
        %v1644 = vsub.s32 %v1641, %v1643
        %v1645 = vrot.slane %v1631, %v1644
        %v1646 = vunpack.i.l.s16 %v1638
        %v1647 = vunpack.i.h.s16 %v1638
        %v1648 = vunpack.i.l.s16 %v1645
        %v1649 = vpack.i.b16 %v1646, %v1646
        %v1650 = vpack.i.b16 %v1647, %v1647
        %v1651 = vpack.i.b16 %v1648, %v1648
        %v1653 = vunpack.c.l.s4 286326784
        %v1654 = vunpack.c.0.s8 %v1653
        %v1655 = vlaneseq
        %v1656 = vshrl.u32 %v1655, 7
        %v1657 = vsub.s32 %v1654, %v1656
        %v1658 = vrot.slane %v1649, %v1657
        %v1660 = vunpack.c.l.s4 286326784
        %v1661 = vunpack.c.0.s8 %v1660
        %v1662 = vlaneseq
        %v1663 = vshrl.u32 %v1662, 7
        %v1664 = vsub.s32 %v1661, %v1663
        %v1665 = vrot.slane %v1650, %v1664
        %v1667 = vunpack.c.l.s4 286326784
        %v1668 = vunpack.c.0.s8 %v1667
        %v1669 = vlaneseq
        %v1670 = vshrl.u32 %v1669, 7
        %v1671 = vsub.s32 %v1668, %v1670
        %v1672 = vrot.slane %v1651, %v1671
        %vm1676 = vsmask.f32 7938
        %vm1677 = vmand %vm1564, %vm1676
        %v1678 = vld [vmem:[%s231] sm:$0x1]
        %v1679 = vsel %vm1677, %v1658, %v1678
        %1680 = vst [vmem:[%s231] sm:$0x1] %v1679
        %v1681 = vld [vmem:[%s231 + $0x4] sm:$0x1]
        %v1682 = vsel %vm1677, %v1665, %v1681
        %1683 = vst [vmem:[%s231 + $0x4] sm:$0x1] %v1682
        %v1684 = vld [vmem:[%s231 + $0x8] sm:$0x1]
        %v1685 = vsel %vm1677, %v1672, %v1684
        %1686 = vst [vmem:[%s231 + $0x8] sm:$0x1] %v1685
        %1687 = vrot.lane.b32.xlu0 %v1457, 96
        %v1688 = vpop.permute.xlu0 %1687
        %v1690 = vsel %vm1466, %v1688, 0
        %1692 = vmatprep.subr.bf16.mxu0 0
        %1693 = vmatpush1.bf16.msra.mxu0 0
        %1694 = vmatprep.subr.bf16.mxu0 0
        %1695 = vmatpush1.bf16.msra.mxu0 0
        %1696 = vmatprep.subr.bf16.mxu0 0
        %1697 = vmatpush1.bf16.msra.mxu0 0
        %1698 = vmatprep.subr.bf16.mxu0 0
        %1699 = vmatpush1.bf16.msra.mxu0 0
        %1700 = vmatprep.subr.bf16.mxu0 0
        %1701 = vmatpush1.bf16.msra.mxu0 0
        %1702 = vmatprep.subr.bf16.mxu0 0
        %1703 = vmatpush1.bf16.msra.mxu0 0
        %1704 = vmatprep.subr.bf16.mxu0 0
        %1705 = vmatpush1.bf16.msra.mxu0 0
        %1706 = vmatprep.subr.bf16.mxu0 0
        %1707 = vmatpush1.bf16.msra.mxu0 %v1464
        %1708 = vmatprep.subr.bf16.mxu0 0
        %1709 = vmatpush2.bf16.msra.mxu0 0
        %1710 = vmatprep.subr.bf16.mxu0 0
        %1711 = vmatpush2.bf16.msra.mxu0 0
        %1712 = vmatprep.subr.bf16.mxu0 0
        %1713 = vmatpush2.bf16.msra.mxu0 0
        %1714 = vmatprep.subr.bf16.mxu0 0
        %1715 = vmatpush2.bf16.msra.mxu0 0
        %1716 = vmatprep.subr.bf16.mxu0 0
        %1717 = vmatpush2.bf16.msra.mxu0 0
        %1718 = vmatprep.subr.bf16.mxu0 0
        %1719 = vmatpush2.bf16.msra.mxu0 0
        %1720 = vmatprep.subr.bf16.mxu0 0
        %1721 = vmatpush2.bf16.msra.mxu0 0
        %1722 = vmatprep.subr.bf16.mxu0 0
        %1723 = vmatpush2.bf16.msra.mxu0 0
        %1724 = vmatprep.mubr.bf16.mxu0 0
        %1725 = vmatmul.mubr.bf16.gmra.mxu0 %v1690
        %v1726 = vpop.f32.mrf.mxu0
        %v1727 = vadd.f32 0.0, %v1726
        %v1728 = vpop.f32.mrf.mxu0
        %v1729 = vpop.f32.mrf.mxu0
        %v1730 = vpop.f32.mrf.mxu0
        %1731 = vdwg.mxu0
        %v1732 = vpack.c.bf16 %v1727, %v1727
        %v1735 = vunpack.c.l.s4 1966171168
        %v1736 = vunpack.c.0.s8 %v1735
        %v1737 = vlaneseq
        %v1738 = vshrl.u32 %v1737, 7
        %v1739 = vsub.s32 %v1736, %v1738
        %v1740 = vrot.slane %v1732, %v1739
        %v1741 = vcombine.high %v1740, %v1740
        %v1743 = vunpack.c.l.s4 1966171168
        %v1744 = vunpack.c.0.s8 %v1743
        %v1745 = vlaneseq
        %v1746 = vshrl.u32 %v1745, 7
        %v1747 = vsub.s32 %v1744, %v1746
        %v1748 = vrot.slane %v1740, %v1747
        %v1750 = vunpack.c.l.s4 1966171168
        %v1751 = vunpack.c.0.s8 %v1750
        %v1752 = vlaneseq
        %v1753 = vshrl.u32 %v1752, 7
        %v1754 = vsub.s32 %v1751, %v1753
        %v1755 = vrot.slane %v1741, %v1754
        %v1756 = vunpack.i.l.s16 %v1748
        %v1757 = vunpack.i.h.s16 %v1748
        %v1758 = vunpack.i.l.s16 %v1755
        %v1759 = vpack.i.b16 %v1756, %v1756
        %v1760 = vpack.i.b16 %v1757, %v1757
        %v1761 = vpack.i.b16 %v1758, %v1758
        %v1763 = vunpack.c.l.s4 286326784
        %v1764 = vunpack.c.0.s8 %v1763
        %v1765 = vlaneseq
        %v1766 = vshrl.u32 %v1765, 7
        %v1767 = vsub.s32 %v1764, %v1766
        %v1768 = vrot.slane %v1759, %v1767
        %v1770 = vunpack.c.l.s4 286326784
        %v1771 = vunpack.c.0.s8 %v1770
        %v1772 = vlaneseq
        %v1773 = vshrl.u32 %v1772, 7
        %v1774 = vsub.s32 %v1771, %v1773
        %v1775 = vrot.slane %v1760, %v1774
        %v1777 = vunpack.c.l.s4 286326784
        %v1778 = vunpack.c.0.s8 %v1777
        %v1779 = vlaneseq
        %v1780 = vshrl.u32 %v1779, 7
        %v1781 = vsub.s32 %v1778, %v1780
        %v1782 = vrot.slane %v1761, %v1781
        %vm1786 = vcmask 517121
        %vm1787 = vsmask.f32 1280
        %vm1788 = vmand %vm1786, %vm1787
        %v1789 = vld [vmem:[%s231] sm:$0x2]
        %v1790 = vsel %vm1788, %v1768, %v1789
        %1791 = vst [vmem:[%s231] sm:$0x2] %v1790
        %v1792 = vld [vmem:[%s231 + $0x4] sm:$0x2]
        %v1793 = vsel %vm1788, %v1775, %v1792
        %1794 = vst [vmem:[%s231 + $0x4] sm:$0x2] %v1793
        %v1795 = vld [vmem:[%s231 + $0x8] sm:$0x2]
        %v1796 = vsel %vm1788, %v1782, %v1795
        %1797 = vst [vmem:[%s231 + $0x8] sm:$0x2] %v1796
        %1798 = vrot.lane.b32.xlu0 %v1457, 80
        %v1799 = vpop.permute.xlu0 %1798
        %v1801 = vsel %vm1466, %v1799, 0
        %1803 = vmatprep.subr.bf16.mxu0 0
        %1804 = vmatpush1.bf16.msra.mxu0 0
        %1805 = vmatprep.subr.bf16.mxu0 0
        %1806 = vmatpush1.bf16.msra.mxu0 0
        %1807 = vmatprep.subr.bf16.mxu0 0
        %1808 = vmatpush1.bf16.msra.mxu0 0
        %1809 = vmatprep.subr.bf16.mxu0 0
        %1810 = vmatpush1.bf16.msra.mxu0 0
        %1811 = vmatprep.subr.bf16.mxu0 0
        %1812 = vmatpush1.bf16.msra.mxu0 0
        %1813 = vmatprep.subr.bf16.mxu0 0
        %1814 = vmatpush1.bf16.msra.mxu0 0
        %1815 = vmatprep.subr.bf16.mxu0 0
        %1816 = vmatpush1.bf16.msra.mxu0 0
        %1817 = vmatprep.subr.bf16.mxu0 0
        %1818 = vmatpush1.bf16.msra.mxu0 %v1464
        %1819 = vmatprep.subr.bf16.mxu0 0
        %1820 = vmatpush2.bf16.msra.mxu0 0
        %1821 = vmatprep.subr.bf16.mxu0 0
        %1822 = vmatpush2.bf16.msra.mxu0 0
        %1823 = vmatprep.subr.bf16.mxu0 0
        %1824 = vmatpush2.bf16.msra.mxu0 0
        %1825 = vmatprep.subr.bf16.mxu0 0
        %1826 = vmatpush2.bf16.msra.mxu0 0
        %1827 = vmatprep.subr.bf16.mxu0 0
        %1828 = vmatpush2.bf16.msra.mxu0 0
        %1829 = vmatprep.subr.bf16.mxu0 0
        %1830 = vmatpush2.bf16.msra.mxu0 0
        %1831 = vmatprep.subr.bf16.mxu0 0
        %1832 = vmatpush2.bf16.msra.mxu0 0
        %1833 = vmatprep.subr.bf16.mxu0 0
        %1834 = vmatpush2.bf16.msra.mxu0 0
        %1835 = vmatprep.mubr.bf16.mxu0 0
        %1836 = vmatmul.mubr.bf16.gmra.mxu0 %v1801
        %v1837 = vpop.f32.mrf.mxu0
        %v1838 = vadd.f32 0.0, %v1837
        %v1839 = vpop.f32.mrf.mxu0
        %v1840 = vpop.f32.mrf.mxu0
        %v1841 = vpop.f32.mrf.mxu0
        %1842 = vdwg.mxu0
        %v1843 = vpack.c.bf16 %v1838, %v1838
        %v1846 = vunpack.c.l.s4 1966171168
        %v1847 = vunpack.c.0.s8 %v1846
        %v1848 = vlaneseq
        %v1849 = vshrl.u32 %v1848, 7
        %v1850 = vsub.s32 %v1847, %v1849
        %v1851 = vrot.slane %v1843, %v1850
        %v1852 = vcombine.high %v1851, %v1851
        %v1854 = vunpack.c.l.s4 1966171168
        %v1855 = vunpack.c.0.s8 %v1854
        %v1856 = vlaneseq
        %v1857 = vshrl.u32 %v1856, 7
        %v1858 = vsub.s32 %v1855, %v1857
        %v1859 = vrot.slane %v1851, %v1858
        %v1861 = vunpack.c.l.s4 1966171168
        %v1862 = vunpack.c.0.s8 %v1861
        %v1863 = vlaneseq
        %v1864 = vshrl.u32 %v1863, 7
        %v1865 = vsub.s32 %v1862, %v1864
        %v1866 = vrot.slane %v1852, %v1865
        %v1867 = vunpack.i.l.s16 %v1859
        %v1868 = vunpack.i.h.s16 %v1859
        %v1869 = vunpack.i.l.s16 %v1866
        %v1870 = vpack.i.b16 %v1867, %v1867
        %v1871 = vpack.i.b16 %v1868, %v1868
        %v1872 = vpack.i.b16 %v1869, %v1869
        %v1874 = vunpack.c.l.s4 286326784
        %v1875 = vunpack.c.0.s8 %v1874
        %v1876 = vlaneseq
        %v1877 = vshrl.u32 %v1876, 7
        %v1878 = vsub.s32 %v1875, %v1877
        %v1879 = vrot.slane %v1870, %v1878
        %v1881 = vunpack.c.l.s4 286326784
        %v1882 = vunpack.c.0.s8 %v1881
        %v1883 = vlaneseq
        %v1884 = vshrl.u32 %v1883, 7
        %v1885 = vsub.s32 %v1882, %v1884
        %v1886 = vrot.slane %v1871, %v1885
        %v1888 = vunpack.c.l.s4 286326784
        %v1889 = vunpack.c.0.s8 %v1888
        %v1890 = vlaneseq
        %v1891 = vshrl.u32 %v1890, 7
        %v1892 = vsub.s32 %v1889, %v1891
        %v1893 = vrot.slane %v1872, %v1892
        %vm1897 = vsmask.f32 7942
        %vm1898 = vmand %vm1786, %vm1897
        %v1899 = vld [vmem:[%s231] sm:$0x2]
        %v1900 = vsel %vm1898, %v1879, %v1899
        %1901 = vst [vmem:[%s231] sm:$0x2] %v1900
        %v1902 = vld [vmem:[%s231 + $0x4] sm:$0x2]
        %v1903 = vsel %vm1898, %v1886, %v1902
        %1904 = vst [vmem:[%s231 + $0x4] sm:$0x2] %v1903
        %v1905 = vld [vmem:[%s231 + $0x8] sm:$0x2]
        %v1906 = vsel %vm1898, %v1893, %v1905
        %1907 = vst [vmem:[%s231 + $0x8] sm:$0x2] %v1906
        %1908 = vrot.lane.b32.xlu0 %v1457, 64
        %v1909 = vpop.permute.xlu0 %1908
        %v1911 = vsel %vm1466, %v1909, 0
        %1913 = vmatprep.subr.bf16.mxu0 0
        %1914 = vmatpush1.bf16.msra.mxu0 0
        %1915 = vmatprep.subr.bf16.mxu0 0
        %1916 = vmatpush1.bf16.msra.mxu0 0
        %1917 = vmatprep.subr.bf16.mxu0 0
        %1918 = vmatpush1.bf16.msra.mxu0 0
        %1919 = vmatprep.subr.bf16.mxu0 0
        %1920 = vmatpush1.bf16.msra.mxu0 0
        %1921 = vmatprep.subr.bf16.mxu0 0
        %1922 = vmatpush1.bf16.msra.mxu0 0
        %1923 = vmatprep.subr.bf16.mxu0 0
        %1924 = vmatpush1.bf16.msra.mxu0 0
        %1925 = vmatprep.subr.bf16.mxu0 0
        %1926 = vmatpush1.bf16.msra.mxu0 0
        %1927 = vmatprep.subr.bf16.mxu0 0
        %1928 = vmatpush1.bf16.msra.mxu0 %v1464
        %1929 = vmatprep.subr.bf16.mxu0 0
        %1930 = vmatpush2.bf16.msra.mxu0 0
        %1931 = vmatprep.subr.bf16.mxu0 0
        %1932 = vmatpush2.bf16.msra.mxu0 0
        %1933 = vmatprep.subr.bf16.mxu0 0
        %1934 = vmatpush2.bf16.msra.mxu0 0
        %1935 = vmatprep.subr.bf16.mxu0 0
        %1936 = vmatpush2.bf16.msra.mxu0 0
        %1937 = vmatprep.subr.bf16.mxu0 0
        %1938 = vmatpush2.bf16.msra.mxu0 0
        %1939 = vmatprep.subr.bf16.mxu0 0
        %1940 = vmatpush2.bf16.msra.mxu0 0
        %1941 = vmatprep.subr.bf16.mxu0 0
        %1942 = vmatpush2.bf16.msra.mxu0 0
        %1943 = vmatprep.subr.bf16.mxu0 0
        %1944 = vmatpush2.bf16.msra.mxu0 0
        %1945 = vmatprep.mubr.bf16.mxu0 0
        %1946 = vmatmul.mubr.bf16.gmra.mxu0 %v1911
        %v1947 = vpop.f32.mrf.mxu0
        %v1948 = vadd.f32 0.0, %v1947
        %v1949 = vpop.f32.mrf.mxu0
        %v1950 = vpop.f32.mrf.mxu0
        %v1951 = vpop.f32.mrf.mxu0
        %1952 = vdwg.mxu0
        %v1953 = vpack.c.bf16 %v1948, %v1948
        %v1956 = vunpack.c.l.s4 1966171168
        %v1957 = vunpack.c.0.s8 %v1956
        %v1958 = vlaneseq
        %v1959 = vshrl.u32 %v1958, 7
        %v1960 = vsub.s32 %v1957, %v1959
        %v1961 = vrot.slane %v1953, %v1960
        %v1962 = vcombine.high %v1961, %v1961
        %v1964 = vunpack.c.l.s4 1966171168
        %v1965 = vunpack.c.0.s8 %v1964
        %v1966 = vlaneseq
        %v1967 = vshrl.u32 %v1966, 7
        %v1968 = vsub.s32 %v1965, %v1967
        %v1969 = vrot.slane %v1961, %v1968
        %v1971 = vunpack.c.l.s4 1966171168
        %v1972 = vunpack.c.0.s8 %v1971
        %v1973 = vlaneseq
        %v1974 = vshrl.u32 %v1973, 7
        %v1975 = vsub.s32 %v1972, %v1974
        %v1976 = vrot.slane %v1962, %v1975
        %v1977 = vunpack.i.l.s16 %v1969
        %v1978 = vunpack.i.h.s16 %v1969
        %v1979 = vunpack.i.l.s16 %v1976
        %v1980 = vpack.i.b16 %v1977, %v1977
        %v1981 = vpack.i.b16 %v1978, %v1978
        %v1982 = vpack.i.b16 %v1979, %v1979
        %v1984 = vunpack.c.l.s4 286326784
        %v1985 = vunpack.c.0.s8 %v1984
        %v1986 = vlaneseq
        %v1987 = vshrl.u32 %v1986, 7
        %v1988 = vsub.s32 %v1985, %v1987
        %v1989 = vrot.slane %v1980, %v1988
        %v1991 = vunpack.c.l.s4 286326784
        %v1992 = vunpack.c.0.s8 %v1991
        %v1993 = vlaneseq
        %v1994 = vshrl.u32 %v1993, 7
        %v1995 = vsub.s32 %v1992, %v1994
        %v1996 = vrot.slane %v1981, %v1995
        %v1998 = vunpack.c.l.s4 286326784
        %v1999 = vunpack.c.0.s8 %v1998
        %v2000 = vlaneseq
        %v2001 = vshrl.u32 %v2000, 7
        %v2002 = vsub.s32 %v1999, %v2001
        %v2003 = vrot.slane %v1982, %v2002
        %vm2007 = vcmask 518146
        %vm2008 = vsmask.f32 2304
        %vm2009 = vmand %vm2007, %vm2008
        %v2010 = vld [vmem:[%s231] sm:$0x4]
        %v2011 = vsel %vm2009, %v1989, %v2010
        %2012 = vst [vmem:[%s231] sm:$0x4] %v2011
        %v2013 = vld [vmem:[%s231 + $0x4] sm:$0x4]
        %v2014 = vsel %vm2009, %v1996, %v2013
        %2015 = vst [vmem:[%s231 + $0x4] sm:$0x4] %v2014
        %v2016 = vld [vmem:[%s231 + $0x8] sm:$0x4]
        %v2017 = vsel %vm2009, %v2003, %v2016
        %2018 = vst [vmem:[%s231 + $0x8] sm:$0x4] %v2017
        %2019 = vrot.lane.b32.xlu0 %v1457, 48
        %v2020 = vpop.permute.xlu0 %2019
        %v2022 = vsel %vm1466, %v2020, 0
        %2024 = vmatprep.subr.bf16.mxu0 0
        %2025 = vmatpush1.bf16.msra.mxu0 0
        %2026 = vmatprep.subr.bf16.mxu0 0
        %2027 = vmatpush1.bf16.msra.mxu0 0
        %2028 = vmatprep.subr.bf16.mxu0 0
        %2029 = vmatpush1.bf16.msra.mxu0 0
        %2030 = vmatprep.subr.bf16.mxu0 0
        %2031 = vmatpush1.bf16.msra.mxu0 0
        %2032 = vmatprep.subr.bf16.mxu0 0
        %2033 = vmatpush1.bf16.msra.mxu0 0
        %2034 = vmatprep.subr.bf16.mxu0 0
        %2035 = vmatpush1.bf16.msra.mxu0 0
        %2036 = vmatprep.subr.bf16.mxu0 0
        %2037 = vmatpush1.bf16.msra.mxu0 0
        %2038 = vmatprep.subr.bf16.mxu0 0
        %2039 = vmatpush1.bf16.msra.mxu0 %v1464
        %2040 = vmatprep.subr.bf16.mxu0 0
        %2041 = vmatpush2.bf16.msra.mxu0 0
        %2042 = vmatprep.subr.bf16.mxu0 0
        %2043 = vmatpush2.bf16.msra.mxu0 0
        %2044 = vmatprep.subr.bf16.mxu0 0
        %2045 = vmatpush2.bf16.msra.mxu0 0
        %2046 = vmatprep.subr.bf16.mxu0 0
        %2047 = vmatpush2.bf16.msra.mxu0 0
        %2048 = vmatprep.subr.bf16.mxu0 0
        %2049 = vmatpush2.bf16.msra.mxu0 0
        %2050 = vmatprep.subr.bf16.mxu0 0
        %2051 = vmatpush2.bf16.msra.mxu0 0
        %2052 = vmatprep.subr.bf16.mxu0 0
        %2053 = vmatpush2.bf16.msra.mxu0 0
        %2054 = vmatprep.subr.bf16.mxu0 0
        %2055 = vmatpush2.bf16.msra.mxu0 0
        %2056 = vmatprep.mubr.bf16.mxu0 0
        %2057 = vmatmul.mubr.bf16.gmra.mxu0 %v2022
        %v2058 = vpop.f32.mrf.mxu0
        %v2059 = vadd.f32 0.0, %v2058
        %v2060 = vpop.f32.mrf.mxu0
        %v2061 = vpop.f32.mrf.mxu0
        %v2062 = vpop.f32.mrf.mxu0
        %2063 = vdwg.mxu0
        %v2064 = vpack.c.bf16 %v2059, %v2059
        %v2067 = vunpack.c.l.s4 1966171168
        %v2068 = vunpack.c.0.s8 %v2067
        %v2069 = vlaneseq
        %v2070 = vshrl.u32 %v2069, 7
        %v2071 = vsub.s32 %v2068, %v2070
        %v2072 = vrot.slane %v2064, %v2071
        %v2073 = vcombine.high %v2072, %v2072
        %v2075 = vunpack.c.l.s4 1966171168
        %v2076 = vunpack.c.0.s8 %v2075
        %v2077 = vlaneseq
        %v2078 = vshrl.u32 %v2077, 7
        %v2079 = vsub.s32 %v2076, %v2078
        %v2080 = vrot.slane %v2072, %v2079
        %v2082 = vunpack.c.l.s4 1966171168
        %v2083 = vunpack.c.0.s8 %v2082
        %v2084 = vlaneseq
        %v2085 = vshrl.u32 %v2084, 7
        %v2086 = vsub.s32 %v2083, %v2085
        %v2087 = vrot.slane %v2073, %v2086
        %v2088 = vunpack.i.l.s16 %v2080
        %v2089 = vunpack.i.h.s16 %v2080
        %v2090 = vunpack.i.l.s16 %v2087
        %v2091 = vpack.i.b16 %v2088, %v2088
        %v2092 = vpack.i.b16 %v2089, %v2089
        %v2093 = vpack.i.b16 %v2090, %v2090
        %v2095 = vunpack.c.l.s4 286326784
        %v2096 = vunpack.c.0.s8 %v2095
        %v2097 = vlaneseq
        %v2098 = vshrl.u32 %v2097, 7
        %v2099 = vsub.s32 %v2096, %v2098
        %v2100 = vrot.slane %v2091, %v2099
        %v2102 = vunpack.c.l.s4 286326784
        %v2103 = vunpack.c.0.s8 %v2102
        %v2104 = vlaneseq
        %v2105 = vshrl.u32 %v2104, 7
        %v2106 = vsub.s32 %v2103, %v2105
        %v2107 = vrot.slane %v2092, %v2106
        %v2109 = vunpack.c.l.s4 286326784
        %v2110 = vunpack.c.0.s8 %v2109
        %v2111 = vlaneseq
        %v2112 = vshrl.u32 %v2111, 7
        %v2113 = vsub.s32 %v2110, %v2112
        %v2114 = vrot.slane %v2093, %v2113
        %vm2118 = vsmask.f32 7946
        %vm2119 = vmand %vm2007, %vm2118
        %v2120 = vld [vmem:[%s231] sm:$0x4]
        %v2121 = vsel %vm2119, %v2100, %v2120
        %2122 = vst [vmem:[%s231] sm:$0x4] %v2121
        %v2123 = vld [vmem:[%s231 + $0x4] sm:$0x4]
        %v2124 = vsel %vm2119, %v2107, %v2123
        %2125 = vst [vmem:[%s231 + $0x4] sm:$0x4] %v2124
        %v2126 = vld [vmem:[%s231 + $0x8] sm:$0x4]
        %v2127 = vsel %vm2119, %v2114, %v2126
        %2128 = vst [vmem:[%s231 + $0x8] sm:$0x4] %v2127
        %2129 = vrot.lane.b32.xlu0 %v1457, 32
        %v2130 = vpop.permute.xlu0 %2129
        %v2132 = vsel %vm1466, %v2130, 0
        %2134 = vmatprep.subr.bf16.mxu0 0
        %2135 = vmatpush1.bf16.msra.mxu0 0
        %2136 = vmatprep.subr.bf16.mxu0 0
        %2137 = vmatpush1.bf16.msra.mxu0 0
        %2138 = vmatprep.subr.bf16.mxu0 0
        %2139 = vmatpush1.bf16.msra.mxu0 0
        %2140 = vmatprep.subr.bf16.mxu0 0
        %2141 = vmatpush1.bf16.msra.mxu0 0
        %2142 = vmatprep.subr.bf16.mxu0 0
        %2143 = vmatpush1.bf16.msra.mxu0 0
        %2144 = vmatprep.subr.bf16.mxu0 0
        %2145 = vmatpush1.bf16.msra.mxu0 0
        %2146 = vmatprep.subr.bf16.mxu0 0
        %2147 = vmatpush1.bf16.msra.mxu0 0
        %2148 = vmatprep.subr.bf16.mxu0 0
        %2149 = vmatpush1.bf16.msra.mxu0 %v1464
        %2150 = vmatprep.subr.bf16.mxu0 0
        %2151 = vmatpush2.bf16.msra.mxu0 0
        %2152 = vmatprep.subr.bf16.mxu0 0
        %2153 = vmatpush2.bf16.msra.mxu0 0
        %2154 = vmatprep.subr.bf16.mxu0 0
        %2155 = vmatpush2.bf16.msra.mxu0 0
        %2156 = vmatprep.subr.bf16.mxu0 0
        %2157 = vmatpush2.bf16.msra.mxu0 0
        %2158 = vmatprep.subr.bf16.mxu0 0
        %2159 = vmatpush2.bf16.msra.mxu0 0
        %2160 = vmatprep.subr.bf16.mxu0 0
        %2161 = vmatpush2.bf16.msra.mxu0 0
        %2162 = vmatprep.subr.bf16.mxu0 0
        %2163 = vmatpush2.bf16.msra.mxu0 0
        %2164 = vmatprep.subr.bf16.mxu0 0
        %2165 = vmatpush2.bf16.msra.mxu0 0
        %2166 = vmatprep.mubr.bf16.mxu0 0
        %2167 = vmatmul.mubr.bf16.gmra.mxu0 %v2132
        %v2168 = vpop.f32.mrf.mxu0
        %v2169 = vadd.f32 0.0, %v2168
        %v2170 = vpop.f32.mrf.mxu0
        %v2171 = vpop.f32.mrf.mxu0
        %v2172 = vpop.f32.mrf.mxu0
        %2173 = vdwg.mxu0
        %v2174 = vpack.c.bf16 %v2169, %v2169
        %v2177 = vunpack.c.l.s4 1966171168
        %v2178 = vunpack.c.0.s8 %v2177
        %v2179 = vlaneseq
        %v2180 = vshrl.u32 %v2179, 7
        %v2181 = vsub.s32 %v2178, %v2180
        %v2182 = vrot.slane %v2174, %v2181
        %v2183 = vcombine.high %v2182, %v2182
        %v2185 = vunpack.c.l.s4 1966171168
        %v2186 = vunpack.c.0.s8 %v2185
        %v2187 = vlaneseq
        %v2188 = vshrl.u32 %v2187, 7
        %v2189 = vsub.s32 %v2186, %v2188
        %v2190 = vrot.slane %v2182, %v2189
        %v2192 = vunpack.c.l.s4 1966171168
        %v2193 = vunpack.c.0.s8 %v2192
        %v2194 = vlaneseq
        %v2195 = vshrl.u32 %v2194, 7
        %v2196 = vsub.s32 %v2193, %v2195
        %v2197 = vrot.slane %v2183, %v2196
        %v2198 = vunpack.i.l.s16 %v2190
        %v2199 = vunpack.i.h.s16 %v2190
        %v2200 = vunpack.i.l.s16 %v2197
        %v2201 = vpack.i.b16 %v2198, %v2198
        %v2202 = vpack.i.b16 %v2199, %v2199
        %v2203 = vpack.i.b16 %v2200, %v2200
        %v2205 = vunpack.c.l.s4 286326784
        %v2206 = vunpack.c.0.s8 %v2205
        %v2207 = vlaneseq
        %v2208 = vshrl.u32 %v2207, 7
        %v2209 = vsub.s32 %v2206, %v2208
        %v2210 = vrot.slane %v2201, %v2209
        %v2212 = vunpack.c.l.s4 286326784
        %v2213 = vunpack.c.0.s8 %v2212
        %v2214 = vlaneseq
        %v2215 = vshrl.u32 %v2214, 7
        %v2216 = vsub.s32 %v2213, %v2215
        %v2217 = vrot.slane %v2202, %v2216
        %v2219 = vunpack.c.l.s4 286326784
        %v2220 = vunpack.c.0.s8 %v2219
        %v2221 = vlaneseq
        %v2222 = vshrl.u32 %v2221, 7
        %v2223 = vsub.s32 %v2220, %v2222
        %v2224 = vrot.slane %v2203, %v2223
        %vm2228 = vcmask 519171
        %vm2229 = vmand %vm2228, %vm289
        %v2230 = vld [vmem:[%s231] sm:$0x8]
        %v2231 = vsel %vm2229, %v2210, %v2230
        %2232 = vst [vmem:[%s231] sm:$0x8] %v2231
        %v2233 = vld [vmem:[%s231 + $0x4] sm:$0x8]
        %v2234 = vsel %vm2229, %v2217, %v2233
        %2235 = vst [vmem:[%s231 + $0x4] sm:$0x8] %v2234
        %v2236 = vld [vmem:[%s231 + $0x8] sm:$0x8]
        %v2237 = vsel %vm2229, %v2224, %v2236
        %2238 = vst [vmem:[%s231 + $0x8] sm:$0x8] %v2237
        %2239 = vrot.lane.b32.xlu0 %v1457, 16
        %v2240 = vpop.permute.xlu0 %2239
        %v2242 = vsel %vm1466, %v2240, 0
        %2244 = vmatprep.subr.bf16.mxu0 0
        %2245 = vmatpush1.bf16.msra.mxu0 0
        %2246 = vmatprep.subr.bf16.mxu0 0
        %2247 = vmatpush1.bf16.msra.mxu0 0
        %2248 = vmatprep.subr.bf16.mxu0 0
        %2249 = vmatpush1.bf16.msra.mxu0 0
        %2250 = vmatprep.subr.bf16.mxu0 0
        %2251 = vmatpush1.bf16.msra.mxu0 0
        %2252 = vmatprep.subr.bf16.mxu0 0
        %2253 = vmatpush1.bf16.msra.mxu0 0
        %2254 = vmatprep.subr.bf16.mxu0 0
        %2255 = vmatpush1.bf16.msra.mxu0 0
        %2256 = vmatprep.subr.bf16.mxu0 0
        %2257 = vmatpush1.bf16.msra.mxu0 0
        %2258 = vmatprep.subr.bf16.mxu0 0
        %2259 = vmatpush1.bf16.msra.mxu0 %v1464
        %2260 = vmatprep.subr.bf16.mxu0 0
        %2261 = vmatpush2.bf16.msra.mxu0 0
        %2262 = vmatprep.subr.bf16.mxu0 0
        %2263 = vmatpush2.bf16.msra.mxu0 0
        %2264 = vmatprep.subr.bf16.mxu0 0
        %2265 = vmatpush2.bf16.msra.mxu0 0
        %2266 = vmatprep.subr.bf16.mxu0 0
        %2267 = vmatpush2.bf16.msra.mxu0 0
        %2268 = vmatprep.subr.bf16.mxu0 0
        %2269 = vmatpush2.bf16.msra.mxu0 0
        %2270 = vmatprep.subr.bf16.mxu0 0
        %2271 = vmatpush2.bf16.msra.mxu0 0
        %2272 = vmatprep.subr.bf16.mxu0 0
        %2273 = vmatpush2.bf16.msra.mxu0 0
        %2274 = vmatprep.subr.bf16.mxu0 0
        %2275 = vmatpush2.bf16.msra.mxu0 0
        %2276 = vmatprep.mubr.bf16.mxu0 0
        %2277 = vmatmul.mubr.bf16.gmra.mxu0 %v2242
        %v2278 = vpop.f32.mrf.mxu0
        %v2279 = vadd.f32 0.0, %v2278
        %v2280 = vpop.f32.mrf.mxu0
        %v2281 = vpop.f32.mrf.mxu0
        %v2282 = vpop.f32.mrf.mxu0
        %2283 = vdwg.mxu0
        %v2284 = vpack.c.bf16 %v2279, %v2279
        %v2287 = vunpack.c.l.s4 1966171168
        %v2288 = vunpack.c.0.s8 %v2287
        %v2289 = vlaneseq
        %v2290 = vshrl.u32 %v2289, 7
        %v2291 = vsub.s32 %v2288, %v2290
        %v2292 = vrot.slane %v2284, %v2291
        %v2293 = vcombine.high %v2292, %v2292
        %v2295 = vunpack.c.l.s4 1966171168
        %v2296 = vunpack.c.0.s8 %v2295
        %v2297 = vlaneseq
        %v2298 = vshrl.u32 %v2297, 7
        %v2299 = vsub.s32 %v2296, %v2298
        %v2300 = vrot.slane %v2292, %v2299
        %v2302 = vunpack.c.l.s4 1966171168
        %v2303 = vunpack.c.0.s8 %v2302
        %v2304 = vlaneseq
        %v2305 = vshrl.u32 %v2304, 7
        %v2306 = vsub.s32 %v2303, %v2305
        %v2307 = vrot.slane %v2293, %v2306
        %v2308 = vunpack.i.l.s16 %v2300
        %v2309 = vunpack.i.h.s16 %v2300
        %v2310 = vunpack.i.l.s16 %v2307
        %v2311 = vpack.i.b16 %v2308, %v2308
        %v2312 = vpack.i.b16 %v2309, %v2309
        %v2313 = vpack.i.b16 %v2310, %v2310
        %v2315 = vunpack.c.l.s4 286326784
        %v2316 = vunpack.c.0.s8 %v2315
        %v2317 = vlaneseq
        %v2318 = vshrl.u32 %v2317, 7
        %v2319 = vsub.s32 %v2316, %v2318
        %v2320 = vrot.slane %v2311, %v2319
        %v2322 = vunpack.c.l.s4 286326784
        %v2323 = vunpack.c.0.s8 %v2322
        %v2324 = vlaneseq
        %v2325 = vshrl.u32 %v2324, 7
        %v2326 = vsub.s32 %v2323, %v2325
        %v2327 = vrot.slane %v2312, %v2326
        %v2329 = vunpack.c.l.s4 286326784
        %v2330 = vunpack.c.0.s8 %v2329
        %v2331 = vlaneseq
        %v2332 = vshrl.u32 %v2331, 7
        %v2333 = vsub.s32 %v2330, %v2332
        %v2334 = vrot.slane %v2313, %v2333
        %vm2338 = vsmask.f32 7950
        %vm2339 = vmand %vm2228, %vm2338
        %v2340 = vld [vmem:[%s231] sm:$0x8]
        %v2341 = vsel %vm2339, %v2320, %v2340
        %2342 = vst [vmem:[%s231] sm:$0x8] %v2341
        %v2343 = vld [vmem:[%s231 + $0x4] sm:$0x8]
        %v2344 = vsel %vm2339, %v2327, %v2343
        %2345 = vst [vmem:[%s231 + $0x4] sm:$0x8] %v2344
        %v2346 = vld [vmem:[%s231 + $0x8] sm:$0x8]
        %v2347 = vsel %vm2339, %v2334, %v2346
        %2348 = vst [vmem:[%s231 + $0x8] sm:$0x8] %v2347
        %s2349 = sand.u32 %s151, 1
        %s2350 = scalar_lea.sflag [#allocation4], %s2349
        %s2351 = sand.u32 %s151, 1
        %s2352 = smul.addr %s2351, 12
        %s2353 = scalar_lea.vmem [#allocation3], %s2352
        // Predicated region
        $region41: #{tpu_custom_call.1} parent=39 // pred_check
          %p2354 = pneg %p161
        $region42: #{tpu_custom_call.1} parent=39 // pred_check_branch
          %2356 = sbr.rel (%p2354) target = $region44
        $region43: #{tpu_custom_call.1} parent=39 // pred_region
          %s2358 = ssub.s32 192, 192
          %2359 = vsyncadd %s2350, %s2358
          %s2360 = smul.addr %s23, 6
          %s2361 = sadd.s32 %s24, %s2360
          %s2362 = smul.addr %s2361, 64
          %s2363 = scalar_lea.hbm %s5, %s2362
          %s2364 = sshll.u32 %s2353, 4
          %s2365 = int_to_ptr.vmem [resolvable:$true] %s2364
          %2370 = dma.vmem_to_hbm [thread:$0]  %s2365, 192, %s2363, %s2350, 64, 128, 4
        $region44: #{tpu_custom_call.1} parent=39 // pred_fallthru
          _
      $region40: #{tpu_custom_call.1} parent=5 // pred_fallthru
        _
      %p2371 = scmp.le.s32.totalorder 2, %s14
      // Predicated region
      $region45: #{tpu_custom_call.1} parent=5 // pred_check
        %p2372 = pneg %p2371
      $region46: #{tpu_custom_call.1} parent=5 // pred_check_branch
        %2374 = sbr.rel (%p2372) target = $region48
      $region47: #{tpu_custom_call.1} parent=5 // pred_region
        %s2375 = ssub.s32 %s14, 2
        // Predicated region
        $region49: #{tpu_custom_call.1} parent=47 // pred_check
          %p2376 = pneg %p167
        $region50: #{tpu_custom_call.1} parent=47 // pred_check_branch
          %2378 = sbr.rel (%p2376) target = $region52
        $region51: #{tpu_custom_call.1} parent=47 // pred_region
          %s2379 = sand.u32 %s152, 1
          %s2380 = scalar_lea.sflag [#allocation4], %s2379
          %s2381 = sand.u32 %s152, 1
          %s2382 = smul.addr %s2381, 12
          %s2383 = scalar_lea.vmem [#allocation3], %s2382
          %2384 = dma.done %s2380, 192
        $region52: #{tpu_custom_call.1} parent=47 // pred_fallthru
          _
      $region48: #{tpu_custom_call.1} parent=5 // pred_fallthru
        _
    $region6: #{tpu_custom_call.1} parent=1 // loop_footer
      %s18 = sadd.s32 1, %s14
    $region7: #{tpu_custom_call.1} parent=1 // loop_footer_branch
      %13 = sbr.rel target = $region3
    $region8: #{tpu_custom_call.1} parent=1 // loop_exit
      _
    %2385 = vsyncpa [#allocation4], 1
    %s2386 = scalar_lea.sflag [#allocation4], 1
    %2387 = vsyncpa %s2386, 1

</llo_original>
